<compile_context>
chip_gen: v7x
topology: tpu7x:2x2x1
jax: 0.10.0
libtpu: 0.0.40
codegen_flags: <defaults>
</compile_context>

<pallas_src>
import functools

import numpy as np
import jax
import jax.numpy as jnp
from jax.experimental import pallas as pl
from jax.experimental.pallas import tpu as pltpu

OUT_CH = 256

# VMEM budgets / limits (sized to be safe on every generation; v7x has only
# 64 MiB physical VMEM per TensorCore, v5e/v6e have 128 MiB).
MAIN_VMEM_LIMIT = 48 * 1024 * 1024
GATE_VMEM_LIMIT = 32 * 1024 * 1024
MAIN_BLOCK_BUDGET = 20 * 1024 * 1024   # per buffered copy of (left + out) blocks
GATE_BLOCK_BUDGET = 8 * 1024 * 1024    # per buffered copy of the down block
MAX_LANE_TILE = 8192                   # 4-8K pixel tiles amortize per-step overhead


def _round_down_lane(x):
    """Largest multiple of 128 <= x (floored at 128)."""
    return max(128, (x // 128) * 128)


def _padded_extent(x):
    """x rounded up to a multiple of 128 (minimal single-block extent)."""
    return ((x + 127) // 128) * 128


# ---------------------------------------------------------------------------
# Kernel A: gating branch.
#   grid = (B 'parallel', HW-chunks 'arbitrary').  Steady state: lane-preserving
#   VPU adds into a (C_down, 128) accumulator (no per-chunk XLU reduce / relayout).
#   Finalize (last chunk of each batch): one cross-lane reduce, two tiny GEMVs,
#   sigmoid, write the (256, 1) gate column.
# ---------------------------------------------------------------------------
def gate_kernel(down_ref, w1_ref, b1_ref, w2_ref, b2_ref, gate_ref, acc_ref, *,
                inv_hw, hwd, thw):
    # down_ref: (C_down, THW)  acc_ref: (C_down, 128)  gate_ref: (256, 1)
    c = pl.program_id(1)

    @pl.when(c == 0)
    def _init():
        acc_ref[...] = jnp.zeros_like(acc_ref)

    chunk = down_ref[...]
    n_sub = thw // 128
    ragged = (hwd % thw) != 0          # static: masking only compiled in if needed
    if ragged:
        lane = jax.lax.broadcasted_iota(jnp.int32, (chunk.shape[0], 128), 1)
        rem = hwd - c * thw            # valid pixels in this chunk

    def lane_slice(s):
        sl = chunk[:, s * 128:(s + 1) * 128].astype(jnp.float32)
        if ragged:
            sl = jnp.where(lane < (rem - s * 128), sl, 0.0)
        return sl

    partial = lane_slice(0)
    for s in range(1, n_sub):          # pure aligned VPU adds, no relayout
        partial = partial + lane_slice(s)
    acc_ref[...] += partial

    @pl.when(c == pl.num_programs(1) - 1)
    def _finalize():
        mean = jnp.sum(acc_ref[...], axis=1, keepdims=True) * inv_hw      # (C_down, 1)
        h = jnp.dot(w1_ref[...], mean,
                    preferred_element_type=jnp.float32) + b1_ref[...]     # (256, 1)
        h = jnp.maximum(h, 0.0)                                           # relu(conv1)
        g = jnp.dot(w2_ref[...], h,
                    preferred_element_type=jnp.float32) + b2_ref[...]     # (256, 1)
        gate_ref[...] = jax.nn.sigmoid(g)


# ---------------------------------------------------------------------------
# Kernel B: main branch, NCHW-native streaming matmul.
#   per (pixel-tile, batch): (256, C_left) @ (C_left, TP) -> (256, TP), relu.
#   BN AND the sigmoid gate are pre-folded into the per-batch weights/bias, so
#   the steady-state loop has no extra VPU multiply or gate input stream.
# ---------------------------------------------------------------------------
def main_kernel(left_ref, w0_ref, b0_ref, out_ref, *, mxu_dtype):
    x = left_ref[...]                                    # (C_left, TP)
    w = w0_ref[...]                                      # (256, C_left)
    if x.dtype != mxu_dtype:
        x = x.astype(mxu_dtype)
    if w.dtype != mxu_dtype:
        w = w.astype(mxu_dtype)
    y = jnp.dot(w, x, preferred_element_type=jnp.float32) + b0_ref[...]
    out_ref[...] = jnp.maximum(y, 0.0).astype(out_ref.dtype)


def ca_forward(left_nchw, down_nchw, params, *, out_dtype=None, mxu_dtype=None):
    """left: (B, C_left, H, W), down: (B, C_down, H, W) -> (B, 256, H, W).

    out_dtype : output dtype (default: left's dtype).  Pass jnp.bfloat16 on
                store-bandwidth-bound chips (e.g. v5e) to halve the dominant
                256xHW output stream; all math stays f32-accumulated.
    mxu_dtype : dtype fed to the MXU for the main conv (default: bf16 when
                C_left >= 64, else the input dtype).  bf16 avoids the 3-6x
                f32-emulation matmul cost where the contraction is wide.
    """
    B, C_left, H, W = left_nchw.shape
    Bd, C_down, Hd, Wd = down_nchw.shape
    assert Bd == B
    HW, HWd = H * W, Hd * Wd

    if out_dtype is None:
        out_dtype = left_nchw.dtype
    if mxu_dtype is None:
        mxu_dtype = jnp.bfloat16 if C_left >= 64 else left_nchw.dtype
    mxu_dtype = np.dtype(mxu_dtype)

    # NCHW-native flat views: pure reshapes, no data movement.
    left_r = left_nchw.reshape(B, C_left, HW)
    down_r = down_nchw.reshape(B, C_down, HWd)

    # Fold BatchNorm (eval) into conv0.
    eps = 1e-5
    scale = params["bn_gamma"] / jnp.sqrt(params["bn_var"] + eps)            # (256,)
    w0f = params["w0"] * scale[:, None]                                      # (256, C_left)
    b0f = (params["b0"] - params["bn_mean"]) * scale + params["bn_beta"]     # (256,)

    w1 = params["w1"]                       # (256, C_down)
    b1 = params["b1"][:, None]              # (256, 1)
    w2 = params["w2"]                       # (256, 256)
    b2 = params["b2"][:, None]              # (256, 1)

    # ---- gating branch ----
    down_isz = np.dtype(down_r.dtype).itemsize
    THW = min(_round_down_lane(GATE_BLOCK_BUDGET // max(1, C_down * down_isz)),
              MAX_LANE_TILE, _padded_extent(HWd))
    n_chunks = pl.cdiv(HWd, THW)

    gate_cost = pl.CostEstimate(
        flops=int(B * C_down * HWd + 2 * B * C_down * OUT_CH + 2 * B * OUT_CH * OUT_CH),
        transcendentals=int(B * OUT_CH),
        bytes_accessed=int(B * C_down * HWd * down_isz
                           + OUT_CH * (C_down + OUT_CH + 2) * 4 + B * OUT_CH * 4))

    gate = pl.pallas_call(
        functools.partial(gate_kernel, inv_hw=1.0 / HWd, hwd=HWd, thw=THW),
        out_shape=jax.ShapeDtypeStruct((B, OUT_CH, 1), jnp.float32),
        grid=(B, n_chunks),
        in_specs=[
            pl.BlockSpec((None, C_down, THW), lambda b, c: (b, 0, c)),
            pl.BlockSpec((OUT_CH, C_down), lambda b, c: (0, 0)),
            pl.BlockSpec((OUT_CH, 1), lambda b, c: (0, 0)),
            pl.BlockSpec((OUT_CH, OUT_CH), lambda b, c: (0, 0)),
            pl.BlockSpec((OUT_CH, 1), lambda b, c: (0, 0)),
        ],
        out_specs=pl.BlockSpec((None, OUT_CH, 1), lambda b, c: (b, 0, 0)),
        scratch_shapes=[pltpu.VMEM((C_down, 128), jnp.float32)],
        compiler_params=pltpu.CompilerParams(
            dimension_semantics=("parallel", "arbitrary"),
            vmem_limit_bytes=GATE_VMEM_LIMIT),
        cost_estimate=gate_cost,
    )(down_r, w1, b1, w2, b2)

    # Fold the (strictly positive) sigmoid gate into conv0's weights/bias:
    #   relu(W0 x + b0) * g == relu((g (*) W0) x + g (*) b0)   since g > 0.
    # Tiny O(B*256*C_left) XLA ops; removes the gate stream + per-tile multiply.
    w0g = w0f[None, :, :] * gate                   # (B, 256, C_left)
    b0g = b0f[None, :, None] * gate                # (B, 256, 1)

    # ---- main branch ----
    left_isz = np.dtype(left_r.dtype).itemsize
    out_isz = np.dtype(out_dtype).itemsize
    per_pix = C_left * left_isz + OUT_CH * out_isz
    w_bytes = OUT_CH * (C_left + 1) * 4
    TP = min(_round_down_lane((MAIN_BLOCK_BUDGET - 2 * w_bytes) // per_pix),
             MAX_LANE_TILE, _padded_extent(HW))
    n_pix = pl.cdiv(HW, TP)

    main_cost = pl.CostEstimate(
        flops=int(2 * B * HW * C_left * OUT_CH),
        transcendentals=0,
        bytes_accessed=int(B * C_left * HW * left_isz + B * OUT_CH * HW * out_isz
                           + B * OUT_CH * (C_left + 1) * 4))

    out_flat = pl.pallas_call(
        functools.partial(main_kernel, mxu_dtype=mxu_dtype),
        out_shape=jax.ShapeDtypeStruct((B, OUT_CH, HW), out_dtype),
        # Pixel-tile axis first so megacore chips still split work when B == 1.
        grid=(n_pix, B),
        in_specs=[
            pl.BlockSpec((None, C_left, TP), lambda p, b: (b, 0, p)),
            pl.BlockSpec((None, OUT_CH, C_left), lambda p, b: (b, 0, 0)),
            pl.BlockSpec((None, OUT_CH, 1), lambda p, b: (b, 0, 0)),
        ],
        out_specs=pl.BlockSpec((None, OUT_CH, TP), lambda p, b: (b, 0, p)),
        compiler_params=pltpu.CompilerParams(
            dimension_semantics=("parallel", "parallel"),
            vmem_limit_bytes=MAIN_VMEM_LIMIT),
        cost_estimate=main_cost,
    )(left_r, w0g, b0g)

    # Pure reshape back to NCHW.
    return out_flat.reshape(B, OUT_CH, H, W)


def ca_reference(left_nchw, down_nchw, params):
    """Pure-JAX reference (same eval-mode BN semantics) for verification."""
    eps = 1e-5
    hi = jax.lax.Precision.HIGHEST
    x = jnp.einsum("bchw,oc->bohw", left_nchw, params["w0"],
                   precision=hi) + params["b0"][None, :, None, None]
    x = (x - params["bn_mean"][None, :, None, None]) / jnp.sqrt(
        params["bn_var"][None, :, None, None] + eps)
    x = x * params["bn_gamma"][None, :, None, None] + params["bn_beta"][None, :, None, None]
    x = jnp.maximum(x, 0.0)
    d = jnp.mean(down_nchw, axis=(2, 3), keepdims=True)
    d = jnp.einsum("bchw,oc->bohw", d, params["w1"],
                   precision=hi) + params["b1"][None, :, None, None]
    d = jnp.maximum(d, 0.0)
    d = jnp.einsum("bchw,oc->bohw", d, params["w2"],
                   precision=hi) + params["b2"][None, :, None, None]
    d = jax.nn.sigmoid(d)
    return x * d


def make_params(key, c_left, c_down):
    ks = jax.random.split(key, 6)
    f = lambda k, shape, s: (jax.random.normal(k, shape, jnp.float32) * s)
    return {
        "w0": f(ks[0], (OUT_CH, c_left), 0.1),
        "b0": f(ks[1], (OUT_CH,), 0.05),
        "w1": f(ks[2], (OUT_CH, c_down), 0.1),
        "b1": f(ks[3], (OUT_CH,), 0.05),
        "w2": f(ks[4], (OUT_CH, OUT_CH), 0.05),
        "b2": f(ks[5], (OUT_CH,), 0.05),
        # BN eval-mode parameters / running stats (deterministic, non-trivial)
        "bn_gamma": jnp.linspace(0.9, 1.1, OUT_CH, dtype=jnp.float32),
        "bn_beta": jnp.linspace(-0.1, 0.1, OUT_CH, dtype=jnp.float32),
        "bn_mean": jnp.linspace(-0.05, 0.05, OUT_CH, dtype=jnp.float32),
        "bn_var": jnp.linspace(0.8, 1.2, OUT_CH, dtype=jnp.float32),
    }


if __name__ == "__main__":
    key = jax.random.PRNGKey(0)
    k1, k2, k3, k4, k5 = jax.random.split(key, 5)

    # --- Test 1: canonical small shapes, f32 path ---
    B, C_left, C_down, H, W = 2, 4, 8, 16, 16
    left = jax.random.normal(k1, (B, C_left, H, W), jnp.float32)
    down = jax.random.normal(k2, (B, C_down, H, W), jnp.float32)
    params = make_params(k3, C_left, C_down)

    out = jax.block_until_ready(ca_forward(left, down, params))
    ref = jax.block_until_ready(ca_reference(left, down, params))
    assert out.shape == (B, OUT_CH, H, W), out.shape
    assert jnp.allclose(out, ref, atol=2e-3, rtol=2e-3), float(jnp.max(jnp.abs(out - ref)))

    # --- Test 2: ragged spatial extent (H*W not a multiple of 128) ---
    left2 = jax.random.normal(k4, (1, 3, 12, 12), jnp.float32)
    down2 = jax.random.normal(k5, (1, 5, 12, 12), jnp.float32)
    params2 = make_params(k3, 3, 5)
    out2 = jax.block_until_ready(ca_forward(left2, down2, params2))
    ref2 = jax.block_until_ready(ca_reference(left2, down2, params2))
    assert out2.shape == (1, OUT_CH, 12, 12), out2.shape
    assert jnp.allclose(out2, ref2, atol=2e-3, rtol=2e-3), float(jnp.max(jnp.abs(out2 - ref2)))

    # --- Test 3: perf config (bf16 MXU inputs + bf16 output), looser tolerance ---
    out3 = jax.block_until_ready(
        ca_forward(left, down, params, out_dtype=jnp.bfloat16, mxu_dtype=jnp.bfloat16))
    out3_f = out3.astype(jnp.float32)
    assert jnp.allclose(out3_f, ref, atol=3e-2, rtol=3e-2), float(jnp.max(jnp.abs(out3_f - ref)))

    print("KERNEL_OK")
</pallas_src>

<mosaic_0001>
module attributes {stable_mosaic.version = 11 : i64} {
  func.func @gate_kernel(%arg0: i32, %arg1: i32, %arg2: memref<1x8x256xf32, #tpu.memory_space<vmem>>, %arg3: memref<256x8xf32, #tpu.memory_space<vmem>>, %arg4: memref<256x1xf32, #tpu.memory_space<vmem>>, %arg5: memref<256x256xf32, #tpu.memory_space<vmem>>, %arg6: memref<256x1xf32, #tpu.memory_space<vmem>>, %arg7: memref<1x256x1xf32, #tpu.memory_space<vmem>>, %arg8: memref<8x128xf32, #tpu.memory_space<vmem>>) attributes {dimension_semantics = [#tpu.dimension_semantics<parallel>, #tpu.dimension_semantics<arbitrary>], iteration_bounds = array<i64: 2, 1>, scalar_prefetch = 0 : i64, scratch_operands = 1 : i64, tpu.core_type = #tpu.core_type<tc>, window_params = [{transform_indices = @transform_0, window_bounds = array<i64: 1, 8, 256>}, {pipeline_mode = #tpu.pipeline_mode<synchronous>, transform_indices = @transform_1, window_bounds = array<i64: 256, 8>}, {pipeline_mode = #tpu.pipeline_mode<synchronous>, transform_indices = @transform_2, window_bounds = array<i64: 256, 1>}, {pipeline_mode = #tpu.pipeline_mode<synchronous>, transform_indices = @transform_3, window_bounds = array<i64: 256, 256>}, {pipeline_mode = #tpu.pipeline_mode<synchronous>, transform_indices = @transform_4, window_bounds = array<i64: 256, 1>}, {transform_indices = @transform_5, window_bounds = array<i64: 1, 256, 1>}]} {
    %c0_i32 = arith.constant 0 : i32
    %0 = arith.cmpi eq, %arg1, %c0_i32 : i32
    %1 = arith.extui %0 : i1 to i32
    %c0_i32_0 = arith.constant 0 : i32
    %2 = arith.cmpi ne, %1, %c0_i32_0 : i32
    scf.if %2 {
      %cst = arith.constant 0.000000e+00 : f32
      %14 = vector.broadcast %cst : f32 to vector<8x128xf32>
      %c0_9 = arith.constant 0 : index
      %c0_10 = arith.constant 0 : index
      %15 = vector.load %arg8[%c0_9, %c0_10] : memref<8x128xf32, #tpu.memory_space<vmem>>, vector<8x128xf32>
      tpu.vector_store %arg8[%c0_9, %c0_10], %14 {strides = array<i32>} : memref<8x128xf32, #tpu.memory_space<vmem>>, vector<8x128xf32>,
    } else {
    }
    %c0 = arith.constant 0 : index
    %c0_1 = arith.constant 0 : index
    %c0_2 = arith.constant 0 : index
    %3 = vector.load %arg2[%c0, %c0_1, %c0_2] : memref<1x8x256xf32, #tpu.memory_space<vmem>>, vector<1x8x256xf32>
    %4 = vector.shape_cast %3 : vector<1x8x256xf32> to vector<8x256xf32>
    %5 = vector.extract_strided_slice %4 {offsets = [0, 0], sizes = [8, 128], strides = [1, 1]} : vector<8x256xf32> to vector<8x128xf32>
    %6 = vector.extract_strided_slice %4 {offsets = [0, 128], sizes = [8, 128], strides = [1, 1]} : vector<8x256xf32> to vector<8x128xf32>
    %7 = arith.addf %5, %6 : vector<8x128xf32>
    %c0_3 = arith.constant 0 : index
    %c0_4 = arith.constant 0 : index
    %8 = vector.load %arg8[%c0_3, %c0_4] : memref<8x128xf32, #tpu.memory_space<vmem>>, vector<8x128xf32>
    %9 = arith.addf %8, %7 : vector<8x128xf32>
    %c0_5 = arith.constant 0 : index
    %c0_6 = arith.constant 0 : index
    %10 = vector.load %arg8[%c0_5, %c0_6] : memref<8x128xf32, #tpu.memory_space<vmem>>, vector<8x128xf32>
    tpu.vector_store %arg8[%c0_5, %c0_6], %9 {strides = array<i32>} : memref<8x128xf32, #tpu.memory_space<vmem>>, vector<8x128xf32>,
    %c0_i32_7 = arith.constant 0 : i32
    %11 = arith.cmpi eq, %arg1, %c0_i32_7 : i32
    %12 = arith.extui %11 : i1 to i32
    %c0_i32_8 = arith.constant 0 : i32
    %13 = arith.cmpi ne, %12, %c0_i32_8 : i32
    scf.if %13 {
      %c0_9 = arith.constant 0 : index
      %c0_10 = arith.constant 0 : index
      %14 = vector.load %arg8[%c0_9, %c0_10] : memref<8x128xf32, #tpu.memory_space<vmem>>, vector<8x128xf32>
      %cst = arith.constant dense<0.000000e+00> : vector<8xf32>
      %15 = vector.multi_reduction <add>, %14, %cst [1] : vector<8x128xf32> to vector<8xf32>
      %16 = vector.shape_cast %15 : vector<8xf32> to vector<8x1xf32>
      %cst_11 = arith.constant 3.906250e-03 : f32
      %17 = vector.broadcast %cst_11 : f32 to vector<8x1xf32>
      %18 = arith.mulf %16, %17 : vector<8x1xf32>
      %c0_12 = arith.constant 0 : index
      %c0_13 = arith.constant 0 : index
      %19 = vector.load %arg3[%c0_12, %c0_13] : memref<256x8xf32, #tpu.memory_space<vmem>>, vector<256x8xf32>
      %cst_14 = arith.constant dense<0.000000e+00> : vector<256x1xf32>
      %20 = tpu.matmul %19, %18, %cst_14 {dimension_numbers = #tpu.dot_dimension_numbers<[1], [0], [0], [1], [0, 0, 1, 1], [], []>} : vector<256x8xf32>, vector<8x1xf32>, vector<256x1xf32> -> vector<256x1xf32>
      %c0_15 = arith.constant 0 : index
      %c0_16 = arith.constant 0 : index
      %21 = vector.load %arg4[%c0_15, %c0_16] : memref<256x1xf32, #tpu.memory_space<vmem>>, vector<256x1xf32>
      %22 = arith.addf %20, %21 : vector<256x1xf32>
      %cst_17 = arith.constant 0.000000e+00 : f32
      %23 = vector.broadcast %cst_17 : f32 to vector<256x1xf32>
      %24 = arith.maximumf %22, %23 : vector<256x1xf32>
      %c0_18 = arith.constant 0 : index
      %c0_19 = arith.constant 0 : index
      %25 = vector.load %arg5[%c0_18, %c0_19] : memref<256x256xf32, #tpu.memory_space<vmem>>, vector<256x256xf32>
      %cst_20 = arith.constant dense<0.000000e+00> : vector<256x1xf32>
      %26 = tpu.matmul %25, %24, %cst_20 {dimension_numbers = #tpu.dot_dimension_numbers<[1], [0], [0], [1], [0, 0, 1, 1], [], []>} : vector<256x256xf32>, vector<256x1xf32>, vector<256x1xf32> -> vector<256x1xf32>
      %c0_21 = arith.constant 0 : index
      %c0_22 = arith.constant 0 : index
      %27 = vector.load %arg6[%c0_21, %c0_22] : memref<256x1xf32, #tpu.memory_space<vmem>>, vector<256x1xf32>
      %28 = arith.addf %26, %27 : vector<256x1xf32>
      %29 = arith.negf %28 : vector<256x1xf32>
      %30 = math.exp %29 : vector<256x1xf32>
      %cst_23 = arith.constant 1.000000e+00 : f32
      %31 = vector.broadcast %cst_23 : f32 to vector<256x1xf32>
      %32 = arith.addf %31, %30 : vector<256x1xf32>
      %33 = arith.divf %31, %32 : vector<256x1xf32>
      %c0_24 = arith.constant 0 : index
      %c0_25 = arith.constant 0 : index
      %c0_26 = arith.constant 0 : index
      %34 = vector.load %arg7[%c0_24, %c0_25, %c0_26] : memref<1x256x1xf32, #tpu.memory_space<vmem>>, vector<1x256x1xf32>
      %35 = vector.shape_cast %34 : vector<1x256x1xf32> to vector<256x1xf32>
      %36 = vector.shape_cast %33 : vector<256x1xf32> to vector<1x256x1xf32>
      tpu.vector_store %arg7[%c0_24, %c0_25, %c0_26], %36 {strides = array<i32>} : memref<1x256x1xf32, #tpu.memory_space<vmem>>, vector<1x256x1xf32>,
    } else {
    }
    return
  }
  func.func @transform_0(%arg0: i32, %arg1: i32) -> (i32, i32, i32) {
    %c0_i32 = arith.constant 0 : i32
    %c0_i32_0 = arith.constant 0 : i32
    return %arg0, %c0_i32, %arg1 : i32, i32, i32
  }
  func.func @transform_1(%arg0: i32, %arg1: i32) -> (i32, i32) {
    %c0_i32 = arith.constant 0 : i32
    %c0_i32_0 = arith.constant 0 : i32
    %c0_i32_1 = arith.constant 0 : i32
    return %c0_i32, %c0_i32_0 : i32, i32
  }
  func.func @transform_2(%arg0: i32, %arg1: i32) -> (i32, i32) {
    %c0_i32 = arith.constant 0 : i32
    %c0_i32_0 = arith.constant 0 : i32
    %c0_i32_1 = arith.constant 0 : i32
    return %c0_i32, %c0_i32_0 : i32, i32
  }
  func.func @transform_3(%arg0: i32, %arg1: i32) -> (i32, i32) {
    %c0_i32 = arith.constant 0 : i32
    %c0_i32_0 = arith.constant 0 : i32
    %c0_i32_1 = arith.constant 0 : i32
    return %c0_i32, %c0_i32_0 : i32, i32
  }
  func.func @transform_4(%arg0: i32, %arg1: i32) -> (i32, i32) {
    %c0_i32 = arith.constant 0 : i32
    %c0_i32_0 = arith.constant 0 : i32
    %c0_i32_1 = arith.constant 0 : i32
    return %c0_i32, %c0_i32_0 : i32, i32
  }
  func.func @transform_5(%arg0: i32, %arg1: i32) -> (i32, i32, i32) {
    %c0_i32 = arith.constant 0 : i32
    %c0_i32_0 = arith.constant 0 : i32
    %c0_i32_1 = arith.constant 0 : i32
    return %arg0, %c0_i32, %c0_i32_0 : i32, i32, i32
  }
}

</mosaic_0001>

<llo_original>
// kernel: tpu_custom_call.1
$region0: #{tpu_custom_call.1}
  #allocation0 [shape = 'u32[]', space=smem, size = 0x4, offset = 0x4, fixed_abs, tag = 'smem constant byte address 0x4 - core index']
  #allocation1 [shape = 'u32[144,128]{1,0:T(1,128)}', space=vmem, size = 0x12000, scoped, tag = 'internal scratch']
  #allocation2 [shape = 'f32[8,128]{1,0:T(8,128)}', space=vmem, size = 0x1000, scoped, tag = 'scratch operand']
  %s0 = inlined_call_operand.vmem [shape: f32[2,8,256], index: 0, kind: input, shape index: {}]
  %s1 = inlined_call_operand.vmem [shape: f32[256,8], index: 1, kind: input, shape index: {}]
  %s2 = inlined_call_operand.vmem [shape: f32[256,1], index: 2, kind: input, shape index: {}]
  %s3 = inlined_call_operand.vmem [shape: f32[256,256], index: 3, kind: input, shape index: {}]
  %s4 = inlined_call_operand.vmem [shape: f32[256,1], index: 4, kind: input, shape index: {}]
  %s5 = inlined_call_operand.vmem [shape: f32[2,256,1], index: 5, kind: output, shape index: {}]
  %s6 = sld [smem:[#allocation0]]
  $region61: #{tpu_custom_call.1} parent=0
    _
  %s8 = ssub.s32 1, %s6
  %s9 = scalar_select 0, %s8, %s6
  loop: start=0, step=1, limit=4
  $region2: #{tpu_custom_call.1} parent=0 // loop_pre_header
    _
  $region3: #{tpu_custom_call.1} parent=0 // loop_header
    %s11 = sphi 0, %s15
    %p12 = scmp.ge.s32.totalorder %s11, 4
    %s18 = sphi 0, %s30
    %s19 = sphi 0, %s26
    %s20 = sphi 0, %s18
    %s21 = sphi 0, %s19
    %s22 = sphi 0, %s20
    %s23 = sphi 0, %s21
    %s35 = sphi 0, %s37
    %s38 = sphi 0, %s35
    %s39 = sphi 0, %s38
    %s55 = sphi 0, %s39
    %s59 = sphi 0, %s59
    %s61 = sphi 0, %s59
    %s62 = sphi 0, %s61
    %s76 = sphi 0, %s62
    %s80 = sphi 0, %s80
    %s82 = sphi 0, %s80
    %s83 = sphi 0, %s82
    %s97 = sphi 0, %s83
    %s101 = sphi 0, %s101
    %s103 = sphi 0, %s101
    %s104 = sphi 0, %s103
    %s118 = sphi 0, %s104
    %s122 = sphi 0, %s122
    %s124 = sphi 0, %s122
    %s125 = sphi 0, %s124
    %s139 = sphi 0, %s125
    %s145 = sphi 0, %s147
    %s148 = sphi 0, %s145
    %s149 = sphi 0, %s148
    %s165 = sphi 0, %s149
  $region4: #{tpu_custom_call.1} parent=0 // loop_header_branch
    %14 = sbr.rel (%p12) target = $region8
  $region5: #{tpu_custom_call.1} parent=0 // loop_body
    %s16 = ssub.s32 %s11, 1
    %s17 = ssub.s32 %s11, 2
    %s24 = sadd.s32 1, %s19
    %p25 = scmp.ge.s32.totalorder %s24, 1
    %s26 = scalar_select %p25, 0, %s24
    %s27 = sadd.s32 1, %s18
    %s28 = scalar_select %p25, %s27, %s18
    %p29 = scmp.ge.s32.totalorder %s28, 2
    %s30 = scalar_select %p29, 0, %s28
    %s31 = ssub.s32 %s18, %s30
    %s32 = ssub.s32 %s19, %s26
    %s33 = sor.u32 %s31, %s32
    %p34 = scmp.eq.s32.totalorder %s33, 0
    %s36 = sadd.s32 %s35, 1
    %s37 = scalar_select %p34, %s35, %s36
    %p40 = pneg %p34
    %p41 = scmp.eq.s32.totalorder %s11, 1
    %p42 = por %p40, %p41
    %p43 = scmp.ne.s32.totalorder %s35, %s38
    %p44 = scmp.eq.s32.totalorder %s11, 0
    %p45 = por %p43, %p44
    %p46 = scmp.ne.s32.totalorder %s35, %s38
    %p47 = scmp.eq.s32.totalorder %s16, 1
    %p48 = por %p46, %p47
    %p49 = scmp.ne.s32.totalorder %s38, %s39
    %p50 = scmp.eq.s32.totalorder %s16, 0
    %p51 = por %p49, %p50
    %p52 = scmp.ne.s32.totalorder %s38, %s39
    %p53 = scmp.eq.s32.totalorder %s17, 1
    %p54 = por %p52, %p53
    %p56 = scmp.ne.s32.totalorder %s39, %s55
    %p57 = scmp.eq.s32.totalorder %s17, 0
    %p58 = por %p56, %p57
    %s60 = sadd.s32 %s59, 1
    %p63 = scmp.eq.s32.totalorder %s11, 1
    %p64 = scmp.ne.s32.totalorder %s59, %s61
    %p65 = scmp.eq.s32.totalorder %s11, 0
    %p66 = por %p64, %p65
    %p67 = scmp.ne.s32.totalorder %s59, %s61
    %p68 = scmp.eq.s32.totalorder %s16, 1
    %p69 = por %p67, %p68
    %p70 = scmp.ne.s32.totalorder %s61, %s62
    %p71 = scmp.eq.s32.totalorder %s16, 0
    %p72 = por %p70, %p71
    %p73 = scmp.ne.s32.totalorder %s61, %s62
    %p74 = scmp.eq.s32.totalorder %s17, 1
    %p75 = por %p73, %p74
    %p77 = scmp.ne.s32.totalorder %s62, %s76
    %p78 = scmp.eq.s32.totalorder %s17, 0
    %p79 = por %p77, %p78
    %s81 = sadd.s32 %s80, 1
    %p84 = scmp.eq.s32.totalorder %s11, 1
    %p85 = scmp.ne.s32.totalorder %s80, %s82
    %p86 = scmp.eq.s32.totalorder %s11, 0
    %p87 = por %p85, %p86
    %p88 = scmp.ne.s32.totalorder %s80, %s82
    %p89 = scmp.eq.s32.totalorder %s16, 1
    %p90 = por %p88, %p89
    %p91 = scmp.ne.s32.totalorder %s82, %s83
    %p92 = scmp.eq.s32.totalorder %s16, 0
    %p93 = por %p91, %p92
    %p94 = scmp.ne.s32.totalorder %s82, %s83
    %p95 = scmp.eq.s32.totalorder %s17, 1
    %p96 = por %p94, %p95
    %p98 = scmp.ne.s32.totalorder %s83, %s97
    %p99 = scmp.eq.s32.totalorder %s17, 0
    %p100 = por %p98, %p99
    %s102 = sadd.s32 %s101, 1
    %p105 = scmp.eq.s32.totalorder %s11, 1
    %p106 = scmp.ne.s32.totalorder %s101, %s103
    %p107 = scmp.eq.s32.totalorder %s11, 0
    %p108 = por %p106, %p107
    %p109 = scmp.ne.s32.totalorder %s101, %s103
    %p110 = scmp.eq.s32.totalorder %s16, 1
    %p111 = por %p109, %p110
    %p112 = scmp.ne.s32.totalorder %s103, %s104
    %p113 = scmp.eq.s32.totalorder %s16, 0
    %p114 = por %p112, %p113
    %p115 = scmp.ne.s32.totalorder %s103, %s104
    %p116 = scmp.eq.s32.totalorder %s17, 1
    %p117 = por %p115, %p116
    %p119 = scmp.ne.s32.totalorder %s104, %s118
    %p120 = scmp.eq.s32.totalorder %s17, 0
    %p121 = por %p119, %p120
    %s123 = sadd.s32 %s122, 1
    %p126 = scmp.eq.s32.totalorder %s11, 1
    %p127 = scmp.ne.s32.totalorder %s122, %s124
    %p128 = scmp.eq.s32.totalorder %s11, 0
    %p129 = por %p127, %p128
    %p130 = scmp.ne.s32.totalorder %s122, %s124
    %p131 = scmp.eq.s32.totalorder %s16, 1
    %p132 = por %p130, %p131
    %p133 = scmp.ne.s32.totalorder %s124, %s125
    %p134 = scmp.eq.s32.totalorder %s16, 0
    %p135 = por %p133, %p134
    %p136 = scmp.ne.s32.totalorder %s124, %s125
    %p137 = scmp.eq.s32.totalorder %s17, 1
    %p138 = por %p136, %p137
    %p140 = scmp.ne.s32.totalorder %s125, %s139
    %p141 = scmp.eq.s32.totalorder %s17, 0
    %p142 = por %p140, %p141
    %s143 = ssub.s32 %s18, %s30
    %p144 = scmp.eq.s32.totalorder %s143, 0
    %s146 = sadd.s32 %s145, 1
    %s147 = scalar_select %p144, %s145, %s146
    %p150 = pneg %p144
    %p151 = scmp.eq.s32.totalorder %s11, 1
    %p152 = por %p150, %p151
    %p153 = scmp.ne.s32.totalorder %s145, %s148
    %p154 = scmp.eq.s32.totalorder %s11, 0
    %p155 = por %p153, %p154
    %p156 = scmp.ne.s32.totalorder %s145, %s148
    %p157 = scmp.eq.s32.totalorder %s16, 1
    %p158 = por %p156, %p157
    %p159 = scmp.ne.s32.totalorder %s148, %s149
    %p160 = scmp.eq.s32.totalorder %s16, 0
    %p161 = por %p159, %p160
    %p162 = scmp.ne.s32.totalorder %s148, %s149
    %p163 = scmp.eq.s32.totalorder %s17, 1
    %p164 = por %p162, %p163
    %p166 = scmp.ne.s32.totalorder %s149, %s165
    %p167 = scmp.eq.s32.totalorder %s17, 0
    %p168 = por %p166, %p167
    %p169 = scmp.le.s32.totalorder 1, %s11
    %p170 = scmp.lt.s32.totalorder %s11, 3
    %p171 = pnand %p169, %p170
    %p172 = pneg %p171
    // Predicated region
    $region9: #{tpu_custom_call.1} parent=5 // pred_check
      _
    $region10: #{tpu_custom_call.1} parent=5 // pred_check_branch
      %174 = sbr.rel (%p171) target = $region12
    $region11: #{tpu_custom_call.1} parent=5 // pred_region
      %s175 = ssub.s32 %s11, 1
      // Predicated region
      $region13: #{tpu_custom_call.1} parent=11 // pred_check
        %p176 = pneg %p72
      $region14: #{tpu_custom_call.1} parent=11 // pred_check_branch
        %178 = sbr.rel (%p176) target = $region16
      $region15: #{tpu_custom_call.1} parent=11 // pred_region
        _
      $region16: #{tpu_custom_call.1} parent=11 // pred_fallthru
        _
      // Predicated region
      $region17: #{tpu_custom_call.1} parent=11 // pred_check
        %p179 = pneg %p93
      $region18: #{tpu_custom_call.1} parent=11 // pred_check_branch
        %181 = sbr.rel (%p179) target = $region20
      $region19: #{tpu_custom_call.1} parent=11 // pred_region
        _
      $region20: #{tpu_custom_call.1} parent=11 // pred_fallthru
        _
      // Predicated region
      $region21: #{tpu_custom_call.1} parent=11 // pred_check
        %p182 = pneg %p114
      $region22: #{tpu_custom_call.1} parent=11 // pred_check_branch
        %184 = sbr.rel (%p182) target = $region24
      $region23: #{tpu_custom_call.1} parent=11 // pred_region
        _
      $region24: #{tpu_custom_call.1} parent=11 // pred_fallthru
        _
      // Predicated region
      $region25: #{tpu_custom_call.1} parent=11 // pred_check
        %p185 = pneg %p135
      $region26: #{tpu_custom_call.1} parent=11 // pred_check_branch
        %187 = sbr.rel (%p185) target = $region28
      $region27: #{tpu_custom_call.1} parent=11 // pred_region
        _
      $region28: #{tpu_custom_call.1} parent=11 // pred_fallthru
        _
    $region12: #{tpu_custom_call.1} parent=5 // pred_fallthru
      _
    %p188 = scmp.lt.s32.totalorder %s11, 2
    // Predicated region
    $region29: #{tpu_custom_call.1} parent=5 // pred_check
      %p189 = pneg %p188
    $region30: #{tpu_custom_call.1} parent=5 // pred_check_branch
      %191 = sbr.rel (%p189) target = $region32
    $region31: #{tpu_custom_call.1} parent=5 // pred_region
      // Predicated region
      $region33: #{tpu_custom_call.1} parent=31 // pred_check
        %p192 = pneg %p45
      $region34: #{tpu_custom_call.1} parent=31 // pred_check_branch
        %194 = sbr.rel (%p192) target = $region36
      $region35: #{tpu_custom_call.1} parent=31 // pred_region
        %s195 = smul.u32 2, %s19
        %p196 = scmp.lt.s32.totalorder %s18, 1
        %s197 = scalar_select %p196, %s18, 1
        %p198 = scmp.lt.s32.totalorder %s195, 1
        %s199 = scalar_select %p198, %s195, 1
        %s200 = smul.addr %s197, 2
        %s201 = sadd.s32 %s199, %s200
        %s202 = smul.addr %s201, 8
        %s203 = scalar_lea.vmem %s0, %s202
        %s204 = smul.u32 2, %s19
      $region36: #{tpu_custom_call.1} parent=31 // pred_fallthru
        _
    $region32: #{tpu_custom_call.1} parent=5 // pred_fallthru
      _
    %p205 = scmp.le.s32.totalorder 1, %s11
    %p206 = scmp.lt.s32.totalorder %s11, 3
    %p207 = pnand %p205, %p206
    %p208 = pneg %p207
    // Predicated region
    $region37: #{tpu_custom_call.1} parent=5 // pred_check
      _
    $region38: #{tpu_custom_call.1} parent=5 // pred_check_branch
      %210 = sbr.rel (%p207) target = $region40
    $region39: #{tpu_custom_call.1} parent=5 // pred_region
      %s211 = ssub.s32 %s11, 1
      %s212 = smul.u32 2, %s21
      %p213 = scmp.lt.s32.totalorder %s20, 1
      %s214 = scalar_select %p213, %s20, 1
      %p215 = scmp.lt.s32.totalorder %s212, 1
      %s216 = scalar_select %p215, %s212, 1
      %s217 = smul.addr %s214, 2
      %s218 = sadd.s32 %s216, %s217
      %s219 = smul.addr %s218, 8
      %s220 = scalar_lea.vmem %s0, %s219
      %p221 = pneg %p51
      %p222 = pneg %p48
      %p223 = pneg %p72
      %p224 = pneg %p69
      %p225 = pneg %p93
      %p226 = pneg %p90
      %p227 = pneg %p114
      %p228 = pneg %p111
      %p229 = pneg %p135
      %p230 = pneg %p132
      %p231 = pneg %p161
      %p232 = pneg %p158
      %p233 = scmp.lt.s32.totalorder %s20, 1
      %s234 = scalar_select %p233, %s20, 1
      %s235 = smul.addr %s234, 32
      %s236 = smul.addr %s235, 8
      %s237 = scalar_lea.vmem %s5, %s236
      %s238 = smul.u32 2, %s21
      %p239 = scmp.lt.s32.totalorder %s20, 1
      %s240 = scalar_select %p239, %s20, 1
      %p241 = scmp.lt.s32.totalorder %s238, 1
      %s242 = scalar_select %p241, %s238, 1
      %s243 = smul.addr %s240, 2
      %s244 = sadd.s32 %s242, %s243
      %s245 = smul.addr %s244, 8
      %s246 = scalar_lea.vmem %s0, %s245
      %s247 = smul.u32 2, %s21
      %p248 = scmp.lt.s32.totalorder %s20, 1
      %s249 = scalar_select %p248, %s20, 1
      %s250 = smul.addr %s249, 32
      %s251 = smul.addr %s250, 8
      %s252 = scalar_lea.vmem %s5, %s251
      %p253 = scmp.eq.s32.totalorder %s21, 0
      // Predicated region
      $region41: #{tpu_custom_call.1} parent=39 // pred_check
        %p254 = pneg %p253
      $region42: #{tpu_custom_call.1} parent=39 // pred_check_branch
        %256 = sbr.rel (%p254) target = $region44
      $region43: #{tpu_custom_call.1} parent=39 // pred_region
        %257 = vst [vmem:[#allocation2] sm:$0xff] 0.0
      $region44: #{tpu_custom_call.1} parent=39 // pred_fallthru
        _
      %v258 = vld [vmem:[%s246] sm:$0xff]
      %v259 = vld [vmem:[%s246 + $0x8] sm:$0xff]
      %v260 = vadd.f32 %v258, %v259
      %v261 = vld [vmem:[#allocation2] sm:$0xff]
      %v262 = vadd.f32 %v261, %v260
      %263 = vst [vmem:[#allocation2] sm:$0xff] %v262
      // Predicated region
      $region45: #{tpu_custom_call.1} parent=39 // pred_check
        %p264 = pneg %p253
      $region46: #{tpu_custom_call.1} parent=39 // pred_check_branch
        %266 = sbr.rel (%p264) target = $region48
      $region47: #{tpu_custom_call.1} parent=39 // pred_region
        %v267 = vld [vmem:[#allocation2] sm:$0xff]
        %268 = vadd.xlane.f32.xlu0 %v267
        %v269 = vpop.xlane.xlu0 %268
        %v270 = vmul.f32 %v269, 0.00390625
        %v271 = vld [vmem:[%s1] sm:$0xff]
        %v272 = vld [vmem:[%s1 + $0x8] sm:$0xff]
        %v273 = vld [vmem:[%s1 + $0x10] sm:$0xff]
        %v274 = vld [vmem:[%s1 + $0x18] sm:$0xff]
        %v275 = vld [vmem:[%s1 + $0x20] sm:$0xff]
        %v276 = vld [vmem:[%s1 + $0x28] sm:$0xff]
        %v277 = vld [vmem:[%s1 + $0x30] sm:$0xff]
        %v278 = vld [vmem:[%s1 + $0x38] sm:$0xff]
        %v279 = vld [vmem:[%s1 + $0x40] sm:$0xff]
        %v280 = vld [vmem:[%s1 + $0x48] sm:$0xff]
        %v281 = vld [vmem:[%s1 + $0x50] sm:$0xff]
        %v282 = vld [vmem:[%s1 + $0x58] sm:$0xff]
        %v283 = vld [vmem:[%s1 + $0x60] sm:$0xff]
        %v284 = vld [vmem:[%s1 + $0x68] sm:$0xff]
        %v285 = vld [vmem:[%s1 + $0x70] sm:$0xff]
        %v286 = vld [vmem:[%s1 + $0x78] sm:$0xff]
        %v287 = vld [vmem:[%s1 + $0x80] sm:$0xff]
        %v288 = vld [vmem:[%s1 + $0x88] sm:$0xff]
        %v289 = vld [vmem:[%s1 + $0x90] sm:$0xff]
        %v290 = vld [vmem:[%s1 + $0x98] sm:$0xff]
        %v291 = vld [vmem:[%s1 + $0xa0] sm:$0xff]
        %v292 = vld [vmem:[%s1 + $0xa8] sm:$0xff]
        %v293 = vld [vmem:[%s1 + $0xb0] sm:$0xff]
        %v294 = vld [vmem:[%s1 + $0xb8] sm:$0xff]
        %v295 = vld [vmem:[%s1 + $0xc0] sm:$0xff]
        %v296 = vld [vmem:[%s1 + $0xc8] sm:$0xff]
        %v297 = vld [vmem:[%s1 + $0xd0] sm:$0xff]
        %v298 = vld [vmem:[%s1 + $0xd8] sm:$0xff]
        %v299 = vld [vmem:[%s1 + $0xe0] sm:$0xff]
        %v300 = vld [vmem:[%s1 + $0xe8] sm:$0xff]
        %v301 = vld [vmem:[%s1 + $0xf0] sm:$0xff]
        %v302 = vld [vmem:[%s1 + $0xf8] sm:$0xff]
        %v303 = vld [vmem:[%s2] sm:$0xff]
        %v304 = vld [vmem:[%s2 + $0x8] sm:$0xff]
        %v305 = vld [vmem:[%s2 + $0x10] sm:$0xff]
        %v306 = vld [vmem:[%s2 + $0x18] sm:$0xff]
        %v307 = vld [vmem:[%s2 + $0x20] sm:$0xff]
        %v308 = vld [vmem:[%s2 + $0x28] sm:$0xff]
        %v309 = vld [vmem:[%s2 + $0x30] sm:$0xff]
        %v310 = vld [vmem:[%s2 + $0x38] sm:$0xff]
        %v311 = vld [vmem:[%s2 + $0x40] sm:$0xff]
        %v312 = vld [vmem:[%s2 + $0x48] sm:$0xff]
        %v313 = vld [vmem:[%s2 + $0x50] sm:$0xff]
        %v314 = vld [vmem:[%s2 + $0x58] sm:$0xff]
        %v315 = vld [vmem:[%s2 + $0x60] sm:$0xff]
        %v316 = vld [vmem:[%s2 + $0x68] sm:$0xff]
        %v317 = vld [vmem:[%s2 + $0x70] sm:$0xff]
        %v318 = vld [vmem:[%s2 + $0x78] sm:$0xff]
        %v319 = vld [vmem:[%s2 + $0x80] sm:$0xff]
        %v320 = vld [vmem:[%s2 + $0x88] sm:$0xff]
        %v321 = vld [vmem:[%s2 + $0x90] sm:$0xff]
        %v322 = vld [vmem:[%s2 + $0x98] sm:$0xff]
        %v323 = vld [vmem:[%s2 + $0xa0] sm:$0xff]
        %v324 = vld [vmem:[%s2 + $0xa8] sm:$0xff]
        %v325 = vld [vmem:[%s2 + $0xb0] sm:$0xff]
        %v326 = vld [vmem:[%s2 + $0xb8] sm:$0xff]
        %v327 = vld [vmem:[%s2 + $0xc0] sm:$0xff]
        %v328 = vld [vmem:[%s2 + $0xc8] sm:$0xff]
        %v329 = vld [vmem:[%s2 + $0xd0] sm:$0xff]
        %v330 = vld [vmem:[%s2 + $0xd8] sm:$0xff]
        %v331 = vld [vmem:[%s2 + $0xe0] sm:$0xff]
        %v332 = vld [vmem:[%s2 + $0xe8] sm:$0xff]
        %v333 = vld [vmem:[%s2 + $0xf0] sm:$0xff]
        %v334 = vld [vmem:[%s2 + $0xf8] sm:$0xff]
        %vm335 = vcmask 64512
        %v337 = vsel %vm335, %v271, 0
        %v340 = vsel %vm335, %v272, 0
        %v343 = vsel %vm335, %v273, 0
        %v346 = vsel %vm335, %v274, 0
        %v349 = vsel %vm335, %v275, 0
        %v352 = vsel %vm335, %v276, 0
        %v355 = vsel %vm335, %v277, 0
        %v358 = vsel %vm335, %v278, 0
        %v361 = vsel %vm335, %v279, 0
        %v364 = vsel %vm335, %v280, 0
        %v367 = vsel %vm335, %v281, 0
        %v370 = vsel %vm335, %v282, 0
        %v373 = vsel %vm335, %v283, 0
        %v376 = vsel %vm335, %v284, 0
        %v379 = vsel %vm335, %v285, 0
        %v382 = vsel %vm335, %v286, 0
        %v385 = vsel %vm335, %v287, 0
        %v388 = vsel %vm335, %v288, 0
        %v391 = vsel %vm335, %v289, 0
        %v394 = vsel %vm335, %v290, 0
        %v397 = vsel %vm335, %v291, 0
        %v400 = vsel %vm335, %v292, 0
        %v403 = vsel %vm335, %v293, 0
        %v406 = vsel %vm335, %v294, 0
        %v409 = vsel %vm335, %v295, 0
        %v412 = vsel %vm335, %v296, 0
        %v415 = vsel %vm335, %v297, 0
        %v418 = vsel %vm335, %v298, 0
        %v421 = vsel %vm335, %v299, 0
        %v424 = vsel %vm335, %v300, 0
        %v427 = vsel %vm335, %v301, 0
        %v430 = vsel %vm335, %v302, 0
        %432 = vmatprep.subr.mxu0 0.0
        %433 = vmatpush1.msra.mxu0 %v270
        %434 = vmatprep.subr.mxu0 0.0
        %435 = vmatpush1.msra.mxu0 0.0
        %436 = vmatprep.subr.mxu0 0.0
        %437 = vmatpush1.msra.mxu0 0.0
        %438 = vmatprep.subr.mxu0 0.0
        %439 = vmatpush1.msra.mxu0 0.0
        %440 = vmatprep.subr.mxu0 0.0
        %441 = vmatpush1.msra.mxu0 0.0
        %442 = vmatprep.subr.mxu0 0.0
        %443 = vmatpush1.msra.mxu0 0.0
        %444 = vmatprep.subr.mxu0 0.0
        %445 = vmatpush1.msra.mxu0 0.0
        %446 = vmatprep.subr.mxu0 0.0
        %447 = vmatpush1.msra.mxu0 0.0
        %448 = vmatprep.subr.mxu0 0.0
        %449 = vmatpush1.msra.mxu0 0.0
        %450 = vmatprep.subr.mxu0 0.0
        %451 = vmatpush1.msra.mxu0 0.0
        %452 = vmatprep.subr.mxu0 0.0
        %453 = vmatpush1.msra.mxu0 0.0
        %454 = vmatprep.subr.mxu0 0.0
        %455 = vmatpush1.msra.mxu0 0.0
        %456 = vmatprep.subr.mxu0 0.0
        %457 = vmatpush1.msra.mxu0 0.0
        %458 = vmatprep.subr.mxu0 0.0
        %459 = vmatpush1.msra.mxu0 0.0
        %460 = vmatprep.subr.mxu0 0.0
        %461 = vmatpush1.msra.mxu0 0.0
        %462 = vmatprep.subr.mxu0 0.0
        %463 = vmatpush1.msra.mxu0 0.0
        %464 = vmatprep.subr.mxu0 0.0
        %465 = vmatpush1.msra.mxu0 0.0
        %466 = vmatprep.subr.mxu0 0.0
        %467 = vmatpush1.msra.mxu0 0.0
        %468 = vmatprep.subr.mxu0 0.0
        %469 = vmatpush1.msra.mxu0 0.0
        %470 = vmatprep.subr.mxu0 0.0
        %471 = vmatpush1.msra.mxu0 0.0
        %472 = vmatprep.subr.mxu0 0.0
        %473 = vmatpush1.msra.mxu0 0.0
        %474 = vmatprep.subr.mxu0 0.0
        %475 = vmatpush1.msra.mxu0 0.0
        %476 = vmatprep.subr.mxu0 0.0
        %477 = vmatpush1.msra.mxu0 0.0
        %478 = vmatprep.subr.mxu0 0.0
        %479 = vmatpush1.msra.mxu0 0.0
        %480 = vmatprep.subr.mxu0 0.0
        %481 = vmatpush1.msra.mxu0 0.0
        %482 = vmatprep.subr.mxu0 0.0
        %483 = vmatpush1.msra.mxu0 0.0
        %484 = vmatprep.subr.mxu0 0.0
        %485 = vmatpush1.msra.mxu0 0.0
        %486 = vmatprep.subr.mxu0 0.0
        %487 = vmatpush1.msra.mxu0 0.0
        %488 = vmatprep.subr.mxu0 0.0
        %489 = vmatpush1.msra.mxu0 0.0
        %490 = vmatprep.subr.mxu0 0.0
        %491 = vmatpush1.msra.mxu0 0.0
        %492 = vmatprep.subr.mxu0 0.0
        %493 = vmatpush1.msra.mxu0 0.0
        %494 = vmatprep.subr.mxu0 0.0
        %495 = vmatpush1.msra.mxu0 0.0
        %496 = vmatprep.mubr.f32.mxu0 0.0
        %497 = vmatmul.mubr.f32.gmra.mrb[0].mxu0 %v337
        %v498 = vpop.f32.mrb[0].mxu0
        %v499 = vadd.f32 %v303, %v498
        %v500 = vpop.f32.mrb[0].mxu0
        %501 = vmatprep.mubr.f32.mxu0 0.0
        %502 = vmatmul.mubr.f32.gmra.mrb[0].mxu0 %v340
        %v503 = vpop.f32.mrb[0].mxu0
        %v504 = vadd.f32 %v304, %v503
        %v505 = vpop.f32.mrb[0].mxu0
        %506 = vmatprep.mubr.f32.mxu0 0.0
        %507 = vmatmul.mubr.f32.gmra.mrb[0].mxu0 %v343
        %v508 = vpop.f32.mrb[0].mxu0
        %v509 = vadd.f32 %v305, %v508
        %v510 = vpop.f32.mrb[0].mxu0
        %511 = vmatprep.mubr.f32.mxu0 0.0
        %512 = vmatmul.mubr.f32.gmra.mrb[0].mxu0 %v346
        %v513 = vpop.f32.mrb[0].mxu0
        %v514 = vadd.f32 %v306, %v513
        %v515 = vpop.f32.mrb[0].mxu0
        %516 = vmatprep.mubr.f32.mxu0 0.0
        %517 = vmatmul.mubr.f32.gmra.mrb[0].mxu0 %v349
        %v518 = vpop.f32.mrb[0].mxu0
        %v519 = vadd.f32 %v307, %v518
        %v520 = vpop.f32.mrb[0].mxu0
        %521 = vmatprep.mubr.f32.mxu0 0.0
        %522 = vmatmul.mubr.f32.gmra.mrb[0].mxu0 %v352
        %v523 = vpop.f32.mrb[0].mxu0
        %v524 = vadd.f32 %v308, %v523
        %v525 = vpop.f32.mrb[0].mxu0
        %526 = vmatprep.mubr.f32.mxu0 0.0
        %527 = vmatmul.mubr.f32.gmra.mrb[0].mxu0 %v355
        %v528 = vpop.f32.mrb[0].mxu0
        %v529 = vadd.f32 %v309, %v528
        %v530 = vpop.f32.mrb[0].mxu0
        %531 = vmatprep.mubr.f32.mxu0 0.0
        %532 = vmatmul.mubr.f32.gmra.mrb[0].mxu0 %v358
        %v533 = vpop.f32.mrb[0].mxu0
        %v534 = vadd.f32 %v310, %v533
        %v535 = vpop.f32.mrb[0].mxu0
        %536 = vmatprep.mubr.f32.mxu0 0.0
        %537 = vmatmul.mubr.f32.gmra.mrb[0].mxu0 %v361
        %v538 = vpop.f32.mrb[0].mxu0
        %v539 = vadd.f32 %v311, %v538
        %v540 = vpop.f32.mrb[0].mxu0
        %541 = vmatprep.mubr.f32.mxu0 0.0
        %542 = vmatmul.mubr.f32.gmra.mrb[0].mxu0 %v364
        %v543 = vpop.f32.mrb[0].mxu0
        %v544 = vadd.f32 %v312, %v543
        %v545 = vpop.f32.mrb[0].mxu0
        %546 = vmatprep.mubr.f32.mxu0 0.0
        %547 = vmatmul.mubr.f32.gmra.mrb[0].mxu0 %v367
        %v548 = vpop.f32.mrb[0].mxu0
        %v549 = vadd.f32 %v313, %v548
        %v550 = vpop.f32.mrb[0].mxu0
        %551 = vmatprep.mubr.f32.mxu0 0.0
        %552 = vmatmul.mubr.f32.gmra.mrb[0].mxu0 %v370
        %v553 = vpop.f32.mrb[0].mxu0
        %v554 = vadd.f32 %v314, %v553
        %v555 = vpop.f32.mrb[0].mxu0
        %556 = vmatprep.mubr.f32.mxu0 0.0
        %557 = vmatmul.mubr.f32.gmra.mrb[0].mxu0 %v373
        %v558 = vpop.f32.mrb[0].mxu0
        %v559 = vadd.f32 %v315, %v558
        %v560 = vpop.f32.mrb[0].mxu0
        %561 = vmatprep.mubr.f32.mxu0 0.0
        %562 = vmatmul.mubr.f32.gmra.mrb[0].mxu0 %v376
        %v563 = vpop.f32.mrb[0].mxu0
        %v564 = vadd.f32 %v316, %v563
        %v565 = vpop.f32.mrb[0].mxu0
        %566 = vmatprep.mubr.f32.mxu0 0.0
        %567 = vmatmul.mubr.f32.gmra.mrb[0].mxu0 %v379
        %v568 = vpop.f32.mrb[0].mxu0
        %v569 = vadd.f32 %v317, %v568
        %v570 = vpop.f32.mrb[0].mxu0
        %571 = vmatprep.mubr.f32.mxu0 0.0
        %572 = vmatmul.mubr.f32.gmra.mrb[0].mxu0 %v382
        %v573 = vpop.f32.mrb[0].mxu0
        %v574 = vadd.f32 %v318, %v573
        %v575 = vpop.f32.mrb[0].mxu0
        %576 = vmatprep.mubr.f32.mxu0 0.0
        %577 = vmatmul.mubr.f32.gmra.mrb[0].mxu0 %v385
        %v578 = vpop.f32.mrb[0].mxu0
        %v579 = vadd.f32 %v319, %v578
        %v580 = vpop.f32.mrb[0].mxu0
        %581 = vmatprep.mubr.f32.mxu0 0.0
        %582 = vmatmul.mubr.f32.gmra.mrb[0].mxu0 %v388
        %v583 = vpop.f32.mrb[0].mxu0
        %v584 = vadd.f32 %v320, %v583
        %v585 = vpop.f32.mrb[0].mxu0
        %586 = vmatprep.mubr.f32.mxu0 0.0
        %587 = vmatmul.mubr.f32.gmra.mrb[0].mxu0 %v391
        %v588 = vpop.f32.mrb[0].mxu0
        %v589 = vadd.f32 %v321, %v588
        %v590 = vpop.f32.mrb[0].mxu0
        %591 = vmatprep.mubr.f32.mxu0 0.0
        %592 = vmatmul.mubr.f32.gmra.mrb[0].mxu0 %v394
        %v593 = vpop.f32.mrb[0].mxu0
        %v594 = vadd.f32 %v322, %v593
        %v595 = vpop.f32.mrb[0].mxu0
        %596 = vmatprep.mubr.f32.mxu0 0.0
        %597 = vmatmul.mubr.f32.gmra.mrb[0].mxu0 %v397
        %v598 = vpop.f32.mrb[0].mxu0
        %v599 = vadd.f32 %v323, %v598
        %v600 = vpop.f32.mrb[0].mxu0
        %601 = vmatprep.mubr.f32.mxu0 0.0
        %602 = vmatmul.mubr.f32.gmra.mrb[0].mxu0 %v400
        %v603 = vpop.f32.mrb[0].mxu0
        %v604 = vadd.f32 %v324, %v603
        %v605 = vpop.f32.mrb[0].mxu0
        %606 = vmatprep.mubr.f32.mxu0 0.0
        %607 = vmatmul.mubr.f32.gmra.mrb[0].mxu0 %v403
        %v608 = vpop.f32.mrb[0].mxu0
        %v609 = vadd.f32 %v325, %v608
        %v610 = vpop.f32.mrb[0].mxu0
        %611 = vmatprep.mubr.f32.mxu0 0.0
        %612 = vmatmul.mubr.f32.gmra.mrb[0].mxu0 %v406
        %v613 = vpop.f32.mrb[0].mxu0
        %v614 = vadd.f32 %v326, %v613
        %v615 = vpop.f32.mrb[0].mxu0
        %616 = vmatprep.mubr.f32.mxu0 0.0
        %617 = vmatmul.mubr.f32.gmra.mrb[0].mxu0 %v409
        %v618 = vpop.f32.mrb[0].mxu0
        %v619 = vadd.f32 %v327, %v618
        %v620 = vpop.f32.mrb[0].mxu0
        %621 = vmatprep.mubr.f32.mxu0 0.0
        %622 = vmatmul.mubr.f32.gmra.mrb[0].mxu0 %v412
        %v623 = vpop.f32.mrb[0].mxu0
        %v624 = vadd.f32 %v328, %v623
        %v625 = vpop.f32.mrb[0].mxu0
        %626 = vmatprep.mubr.f32.mxu0 0.0
        %627 = vmatmul.mubr.f32.gmra.mrb[0].mxu0 %v415
        %v628 = vpop.f32.mrb[0].mxu0
        %v629 = vadd.f32 %v329, %v628
        %v630 = vpop.f32.mrb[0].mxu0
        %631 = vmatprep.mubr.f32.mxu0 0.0
        %632 = vmatmul.mubr.f32.gmra.mrb[0].mxu0 %v418
        %v633 = vpop.f32.mrb[0].mxu0
        %v634 = vadd.f32 %v330, %v633
        %v635 = vpop.f32.mrb[0].mxu0
        %636 = vmatprep.mubr.f32.mxu0 0.0
        %637 = vmatmul.mubr.f32.gmra.mrb[0].mxu0 %v421
        %v638 = vpop.f32.mrb[0].mxu0
        %v639 = vadd.f32 %v331, %v638
        %v640 = vpop.f32.mrb[0].mxu0
        %641 = vmatprep.mubr.f32.mxu0 0.0
        %642 = vmatmul.mubr.f32.gmra.mrb[0].mxu0 %v424
        %v643 = vpop.f32.mrb[0].mxu0
        %v644 = vadd.f32 %v332, %v643
        %v645 = vpop.f32.mrb[0].mxu0
        %646 = vmatprep.mubr.f32.mxu0 0.0
        %647 = vmatmul.mubr.f32.gmra.mrb[0].mxu0 %v427
        %v648 = vpop.f32.mrb[0].mxu0
        %v649 = vadd.f32 %v333, %v648
        %v650 = vpop.f32.mrb[0].mxu0
        %651 = vmatprep.mubr.f32.mxu0 0.0
        %652 = vmatmul.mubr.f32.gmra.mrb[0].mxu0 %v430
        %v653 = vpop.f32.mrb[0].mxu0
        %v654 = vadd.f32 %v334, %v653
        %v655 = vpop.f32.mrb[0].mxu0
        %656 = vdwg.mxu0
        %v657 = vmax.f32 %v499, 0.0
        %v658 = vmax.f32 %v504, 0.0
        %v659 = vmax.f32 %v509, 0.0
        %v660 = vmax.f32 %v514, 0.0
        %v661 = vmax.f32 %v519, 0.0
        %v662 = vmax.f32 %v524, 0.0
        %v663 = vmax.f32 %v529, 0.0
        %v664 = vmax.f32 %v534, 0.0
        %v665 = vmax.f32 %v539, 0.0
        %v666 = vmax.f32 %v544, 0.0
        %v667 = vmax.f32 %v549, 0.0
        %v668 = vmax.f32 %v554, 0.0
        %v669 = vmax.f32 %v559, 0.0
        %v670 = vmax.f32 %v564, 0.0
        %v671 = vmax.f32 %v569, 0.0
        %v672 = vmax.f32 %v574, 0.0
        %v673 = vmax.f32 %v579, 0.0
        %v674 = vmax.f32 %v584, 0.0
        %v675 = vmax.f32 %v589, 0.0
        %v676 = vmax.f32 %v594, 0.0
        %v677 = vmax.f32 %v599, 0.0
        %v678 = vmax.f32 %v604, 0.0
        %v679 = vmax.f32 %v609, 0.0
        %v680 = vmax.f32 %v614, 0.0
        %v681 = vmax.f32 %v619, 0.0
        %v682 = vmax.f32 %v624, 0.0
        %v683 = vmax.f32 %v629, 0.0
        %v684 = vmax.f32 %v634, 0.0
        %v685 = vmax.f32 %v639, 0.0
        %v686 = vmax.f32 %v644, 0.0
        %v687 = vmax.f32 %v649, 0.0
        %v688 = vmax.f32 %v654, 0.0
        %v689 = vld [vmem:[%s3] sm:$0xff]
        %v690 = vld [vmem:[%s3 + $0x8] sm:$0xff]
        %v691 = vld [vmem:[%s3 + $0x10] sm:$0xff]
        %v692 = vld [vmem:[%s3 + $0x18] sm:$0xff]
        %v693 = vld [vmem:[%s3 + $0x20] sm:$0xff]
        %v694 = vld [vmem:[%s3 + $0x28] sm:$0xff]
        %v695 = vld [vmem:[%s3 + $0x30] sm:$0xff]
        %v696 = vld [vmem:[%s3 + $0x38] sm:$0xff]
        %v697 = vld [vmem:[%s3 + $0x40] sm:$0xff]
        %v698 = vld [vmem:[%s3 + $0x48] sm:$0xff]
        %v699 = vld [vmem:[%s3 + $0x50] sm:$0xff]
        %v700 = vld [vmem:[%s3 + $0x58] sm:$0xff]
        %v701 = vld [vmem:[%s3 + $0x60] sm:$0xff]
        %v702 = vld [vmem:[%s3 + $0x68] sm:$0xff]
        %v703 = vld [vmem:[%s3 + $0x70] sm:$0xff]
        %v704 = vld [vmem:[%s3 + $0x78] sm:$0xff]
        %v705 = vld [vmem:[%s3 + $0x80] sm:$0xff]
        %v706 = vld [vmem:[%s3 + $0x88] sm:$0xff]
        %v707 = vld [vmem:[%s3 + $0x90] sm:$0xff]
        %v708 = vld [vmem:[%s3 + $0x98] sm:$0xff]
        %v709 = vld [vmem:[%s3 + $0xa0] sm:$0xff]
        %v710 = vld [vmem:[%s3 + $0xa8] sm:$0xff]
        %v711 = vld [vmem:[%s3 + $0xb0] sm:$0xff]
        %v712 = vld [vmem:[%s3 + $0xb8] sm:$0xff]
        %v713 = vld [vmem:[%s3 + $0xc0] sm:$0xff]
        %v714 = vld [vmem:[%s3 + $0xc8] sm:$0xff]
        %v715 = vld [vmem:[%s3 + $0xd0] sm:$0xff]
        %v716 = vld [vmem:[%s3 + $0xd8] sm:$0xff]
        %v717 = vld [vmem:[%s3 + $0xe0] sm:$0xff]
        %v718 = vld [vmem:[%s3 + $0xe8] sm:$0xff]
        %v719 = vld [vmem:[%s3 + $0xf0] sm:$0xff]
        %v720 = vld [vmem:[%s3 + $0xf8] sm:$0xff]
        %v721 = vld [vmem:[%s3 + $0x100] sm:$0xff]
        %v722 = vld [vmem:[%s3 + $0x108] sm:$0xff]
        %v723 = vld [vmem:[%s3 + $0x110] sm:$0xff]
        %v724 = vld [vmem:[%s3 + $0x118] sm:$0xff]
        %v725 = vld [vmem:[%s3 + $0x120] sm:$0xff]
        %v726 = vld [vmem:[%s3 + $0x128] sm:$0xff]
        %v727 = vld [vmem:[%s3 + $0x130] sm:$0xff]
        %v728 = vld [vmem:[%s3 + $0x138] sm:$0xff]
        %v729 = vld [vmem:[%s3 + $0x140] sm:$0xff]
        %v730 = vld [vmem:[%s3 + $0x148] sm:$0xff]
        %v731 = vld [vmem:[%s3 + $0x150] sm:$0xff]
        %v732 = vld [vmem:[%s3 + $0x158] sm:$0xff]
        %v733 = vld [vmem:[%s3 + $0x160] sm:$0xff]
        %v734 = vld [vmem:[%s3 + $0x168] sm:$0xff]
        %v735 = vld [vmem:[%s3 + $0x170] sm:$0xff]
        %v736 = vld [vmem:[%s3 + $0x178] sm:$0xff]
        %v737 = vld [vmem:[%s3 + $0x180] sm:$0xff]
        %v738 = vld [vmem:[%s3 + $0x188] sm:$0xff]
        %v739 = vld [vmem:[%s3 + $0x190] sm:$0xff]
        %v740 = vld [vmem:[%s3 + $0x198] sm:$0xff]
        %v741 = vld [vmem:[%s3 + $0x1a0] sm:$0xff]
        %v742 = vld [vmem:[%s3 + $0x1a8] sm:$0xff]
        %v743 = vld [vmem:[%s3 + $0x1b0] sm:$0xff]
        %v744 = vld [vmem:[%s3 + $0x1b8] sm:$0xff]
        %v745 = vld [vmem:[%s3 + $0x1c0] sm:$0xff]
        %v746 = vld [vmem:[%s3 + $0x1c8] sm:$0xff]
        %v747 = vld [vmem:[%s3 + $0x1d0] sm:$0xff]
        %v748 = vld [vmem:[%s3 + $0x1d8] sm:$0xff]
        %v749 = vld [vmem:[%s3 + $0x1e0] sm:$0xff]
        %v750 = vld [vmem:[%s3 + $0x1e8] sm:$0xff]
        %v751 = vld [vmem:[%s3 + $0x1f0] sm:$0xff]
        %v752 = vld [vmem:[%s3 + $0x1f8] sm:$0xff]
        %v753 = vld [vmem:[%s4] sm:$0xff]
        %v754 = vld [vmem:[%s4 + $0x8] sm:$0xff]
        %v755 = vld [vmem:[%s4 + $0x10] sm:$0xff]
        %v756 = vld [vmem:[%s4 + $0x18] sm:$0xff]
        %v757 = vld [vmem:[%s4 + $0x20] sm:$0xff]
        %v758 = vld [vmem:[%s4 + $0x28] sm:$0xff]
        %v759 = vld [vmem:[%s4 + $0x30] sm:$0xff]
        %v760 = vld [vmem:[%s4 + $0x38] sm:$0xff]
        %v761 = vld [vmem:[%s4 + $0x40] sm:$0xff]
        %v762 = vld [vmem:[%s4 + $0x48] sm:$0xff]
        %v763 = vld [vmem:[%s4 + $0x50] sm:$0xff]
        %v764 = vld [vmem:[%s4 + $0x58] sm:$0xff]
        %v765 = vld [vmem:[%s4 + $0x60] sm:$0xff]
        %v766 = vld [vmem:[%s4 + $0x68] sm:$0xff]
        %v767 = vld [vmem:[%s4 + $0x70] sm:$0xff]
        %v768 = vld [vmem:[%s4 + $0x78] sm:$0xff]
        %v769 = vld [vmem:[%s4 + $0x80] sm:$0xff]
        %v770 = vld [vmem:[%s4 + $0x88] sm:$0xff]
        %v771 = vld [vmem:[%s4 + $0x90] sm:$0xff]
        %v772 = vld [vmem:[%s4 + $0x98] sm:$0xff]
        %v773 = vld [vmem:[%s4 + $0xa0] sm:$0xff]
        %v774 = vld [vmem:[%s4 + $0xa8] sm:$0xff]
        %v775 = vld [vmem:[%s4 + $0xb0] sm:$0xff]
        %v776 = vld [vmem:[%s4 + $0xb8] sm:$0xff]
        %v777 = vld [vmem:[%s4 + $0xc0] sm:$0xff]
        %v778 = vld [vmem:[%s4 + $0xc8] sm:$0xff]
        %v779 = vld [vmem:[%s4 + $0xd0] sm:$0xff]
        %v780 = vld [vmem:[%s4 + $0xd8] sm:$0xff]
        %v781 = vld [vmem:[%s4 + $0xe0] sm:$0xff]
        %v782 = vld [vmem:[%s4 + $0xe8] sm:$0xff]
        %v783 = vld [vmem:[%s4 + $0xf0] sm:$0xff]
        %v784 = vld [vmem:[%s4 + $0xf8] sm:$0xff]
        %785 = vmatprep.subr.mxu0 0.0
        %786 = vmatpush1.msra.mxu0 %v657
        %787 = vmatprep.subr.mxu0 0.0
        %788 = vmatpush1.msra.mxu0 %v658
        %789 = vmatprep.subr.mxu0 0.0
        %790 = vmatpush1.msra.mxu0 %v659
        %791 = vmatprep.subr.mxu0 0.0
        %792 = vmatpush1.msra.mxu0 %v660
        %793 = vmatprep.subr.mxu0 0.0
        %794 = vmatpush1.msra.mxu0 %v661
        %795 = vmatprep.subr.mxu0 0.0
        %796 = vmatpush1.msra.mxu0 %v662
        %797 = vmatprep.subr.mxu0 0.0
        %798 = vmatpush1.msra.mxu0 %v663
        %799 = vmatprep.subr.mxu0 0.0
        %800 = vmatpush1.msra.mxu0 %v664
        %801 = vmatprep.subr.mxu0 0.0
        %802 = vmatpush1.msra.mxu0 %v665
        %803 = vmatprep.subr.mxu0 0.0
        %804 = vmatpush1.msra.mxu0 %v666
        %805 = vmatprep.subr.mxu0 0.0
        %806 = vmatpush1.msra.mxu0 %v667
        %807 = vmatprep.subr.mxu0 0.0
        %808 = vmatpush1.msra.mxu0 %v668
        %809 = vmatprep.subr.mxu0 0.0
        %810 = vmatpush1.msra.mxu0 %v669
        %811 = vmatprep.subr.mxu0 0.0
        %812 = vmatpush1.msra.mxu0 %v670
        %813 = vmatprep.subr.mxu0 0.0
        %814 = vmatpush1.msra.mxu0 %v671
        %815 = vmatprep.subr.mxu0 0.0
        %816 = vmatpush1.msra.mxu0 %v672
        %817 = vmatprep.subr.mxu0 0.0
        %818 = vmatpush1.msra.mxu0 %v673
        %819 = vmatprep.subr.mxu0 0.0
        %820 = vmatpush1.msra.mxu0 %v674
        %821 = vmatprep.subr.mxu0 0.0
        %822 = vmatpush1.msra.mxu0 %v675
        %823 = vmatprep.subr.mxu0 0.0
        %824 = vmatpush1.msra.mxu0 %v676
        %825 = vmatprep.subr.mxu0 0.0
        %826 = vmatpush1.msra.mxu0 %v677
        %827 = vmatprep.subr.mxu0 0.0
        %828 = vmatpush1.msra.mxu0 %v678
        %829 = vmatprep.subr.mxu0 0.0
        %830 = vmatpush1.msra.mxu0 %v679
        %831 = vmatprep.subr.mxu0 0.0
        %832 = vmatpush1.msra.mxu0 %v680
        %833 = vmatprep.subr.mxu0 0.0
        %834 = vmatpush1.msra.mxu0 %v681
        %835 = vmatprep.subr.mxu0 0.0
        %836 = vmatpush1.msra.mxu0 %v682
        %837 = vmatprep.subr.mxu0 0.0
        %838 = vmatpush1.msra.mxu0 %v683
        %839 = vmatprep.subr.mxu0 0.0
        %840 = vmatpush1.msra.mxu0 %v684
        %841 = vmatprep.subr.mxu0 0.0
        %842 = vmatpush1.msra.mxu0 %v685
        %843 = vmatprep.subr.mxu0 0.0
        %844 = vmatpush1.msra.mxu0 %v686
        %845 = vmatprep.subr.mxu0 0.0
        %846 = vmatpush1.msra.mxu0 %v687
        %847 = vmatprep.subr.mxu0 0.0
        %848 = vmatpush1.msra.mxu0 %v688
        %849 = vmatprep.mubr.f32.mxu0 %v690
        %850 = vmatmul.mubr.f32.gmra.mrb[0].mxu0 %v689
        %v851 = vpop.f32.mrb[0].mxu0
        %v852 = vadd.f32 %v753, %v851
        %v853 = vpop.f32.mrb[0].mxu0
        %854 = vmatprep.mubr.f32.mxu0 %v692
        %855 = vmatmul.mubr.f32.gmra.mrb[0].mxu0 %v691
        %v856 = vpop.f32.mrb[0].mxu0
        %v857 = vadd.f32 %v754, %v856
        %v858 = vpop.f32.mrb[0].mxu0
        %859 = vmatprep.mubr.f32.mxu0 %v694
        %860 = vmatmul.mubr.f32.gmra.mrb[0].mxu0 %v693
        %v861 = vpop.f32.mrb[0].mxu0
        %v862 = vadd.f32 %v755, %v861
        %v863 = vpop.f32.mrb[0].mxu0
        %864 = vmatprep.mubr.f32.mxu0 %v696
        %865 = vmatmul.mubr.f32.gmra.mrb[0].mxu0 %v695
        %v866 = vpop.f32.mrb[0].mxu0
        %v867 = vadd.f32 %v756, %v866
        %v868 = vpop.f32.mrb[0].mxu0
        %869 = vmatprep.mubr.f32.mxu0 %v698
        %870 = vmatmul.mubr.f32.gmra.mrb[0].mxu0 %v697
        %v871 = vpop.f32.mrb[0].mxu0
        %v872 = vadd.f32 %v757, %v871
        %v873 = vpop.f32.mrb[0].mxu0
        %874 = vmatprep.mubr.f32.mxu0 %v700
        %875 = vmatmul.mubr.f32.gmra.mrb[0].mxu0 %v699
        %v876 = vpop.f32.mrb[0].mxu0
        %v877 = vadd.f32 %v758, %v876
        %v878 = vpop.f32.mrb[0].mxu0
        %879 = vmatprep.mubr.f32.mxu0 %v702
        %880 = vmatmul.mubr.f32.gmra.mrb[0].mxu0 %v701
        %v881 = vpop.f32.mrb[0].mxu0
        %v882 = vadd.f32 %v759, %v881
        %v883 = vpop.f32.mrb[0].mxu0
        %884 = vmatprep.mubr.f32.mxu0 %v704
        %885 = vmatmul.mubr.f32.gmra.mrb[0].mxu0 %v703
        %v886 = vpop.f32.mrb[0].mxu0
        %v887 = vadd.f32 %v760, %v886
        %v888 = vpop.f32.mrb[0].mxu0
        %889 = vmatprep.mubr.f32.mxu0 %v706
        %890 = vmatmul.mubr.f32.gmra.mrb[0].mxu0 %v705
        %v891 = vpop.f32.mrb[0].mxu0
        %v892 = vadd.f32 %v761, %v891
        %v893 = vpop.f32.mrb[0].mxu0
        %894 = vmatprep.mubr.f32.mxu0 %v708
        %895 = vmatmul.mubr.f32.gmra.mrb[0].mxu0 %v707
        %v896 = vpop.f32.mrb[0].mxu0
        %v897 = vadd.f32 %v762, %v896
        %v898 = vpop.f32.mrb[0].mxu0
        %899 = vmatprep.mubr.f32.mxu0 %v710
        %900 = vmatmul.mubr.f32.gmra.mrb[0].mxu0 %v709
        %v901 = vpop.f32.mrb[0].mxu0
        %v902 = vadd.f32 %v763, %v901
        %v903 = vpop.f32.mrb[0].mxu0
        %904 = vmatprep.mubr.f32.mxu0 %v712
        %905 = vmatmul.mubr.f32.gmra.mrb[0].mxu0 %v711
        %v906 = vpop.f32.mrb[0].mxu0
        %v907 = vadd.f32 %v764, %v906
        %v908 = vpop.f32.mrb[0].mxu0
        %909 = vmatprep.mubr.f32.mxu0 %v714
        %910 = vmatmul.mubr.f32.gmra.mrb[0].mxu0 %v713
        %v911 = vpop.f32.mrb[0].mxu0
        %v912 = vadd.f32 %v765, %v911
        %v913 = vpop.f32.mrb[0].mxu0
        %914 = vmatprep.mubr.f32.mxu0 %v716
        %915 = vmatmul.mubr.f32.gmra.mrb[0].mxu0 %v715
        %v916 = vpop.f32.mrb[0].mxu0
        %v917 = vadd.f32 %v766, %v916
        %v918 = vpop.f32.mrb[0].mxu0
        %919 = vmatprep.mubr.f32.mxu0 %v718
        %920 = vmatmul.mubr.f32.gmra.mrb[0].mxu0 %v717
        %v921 = vpop.f32.mrb[0].mxu0
        %v922 = vadd.f32 %v767, %v921
        %v923 = vpop.f32.mrb[0].mxu0
        %924 = vmatprep.mubr.f32.mxu0 %v720
        %925 = vmatmul.mubr.f32.gmra.mrb[0].mxu0 %v719
        %v926 = vpop.f32.mrb[0].mxu0
        %v927 = vadd.f32 %v768, %v926
        %v928 = vpop.f32.mrb[0].mxu0
        %929 = vmatprep.mubr.f32.mxu0 %v722
        %930 = vmatmul.mubr.f32.gmra.mrb[0].mxu0 %v721
        %v931 = vpop.f32.mrb[0].mxu0
        %v932 = vadd.f32 %v769, %v931
        %v933 = vpop.f32.mrb[0].mxu0
        %934 = vmatprep.mubr.f32.mxu0 %v724
        %935 = vmatmul.mubr.f32.gmra.mrb[0].mxu0 %v723
        %v936 = vpop.f32.mrb[0].mxu0
        %v937 = vadd.f32 %v770, %v936
        %v938 = vpop.f32.mrb[0].mxu0
        %939 = vmatprep.mubr.f32.mxu0 %v726
        %940 = vmatmul.mubr.f32.gmra.mrb[0].mxu0 %v725
        %v941 = vpop.f32.mrb[0].mxu0
        %v942 = vadd.f32 %v771, %v941
        %v943 = vpop.f32.mrb[0].mxu0
        %944 = vmatprep.mubr.f32.mxu0 %v728
        %945 = vmatmul.mubr.f32.gmra.mrb[0].mxu0 %v727
        %v946 = vpop.f32.mrb[0].mxu0
        %v947 = vadd.f32 %v772, %v946
        %v948 = vpop.f32.mrb[0].mxu0
        %949 = vmatprep.mubr.f32.mxu0 %v730
        %950 = vmatmul.mubr.f32.gmra.mrb[0].mxu0 %v729
        %v951 = vpop.f32.mrb[0].mxu0
        %v952 = vadd.f32 %v773, %v951
        %v953 = vpop.f32.mrb[0].mxu0
        %954 = vmatprep.mubr.f32.mxu0 %v732
        %955 = vmatmul.mubr.f32.gmra.mrb[0].mxu0 %v731
        %v956 = vpop.f32.mrb[0].mxu0
        %v957 = vadd.f32 %v774, %v956
        %v958 = vpop.f32.mrb[0].mxu0
        %959 = vmatprep.mubr.f32.mxu0 %v734
        %960 = vmatmul.mubr.f32.gmra.mrb[0].mxu0 %v733
        %v961 = vpop.f32.mrb[0].mxu0
        %v962 = vadd.f32 %v775, %v961
        %v963 = vpop.f32.mrb[0].mxu0
        %964 = vmatprep.mubr.f32.mxu0 %v736
        %965 = vmatmul.mubr.f32.gmra.mrb[0].mxu0 %v735
        %v966 = vpop.f32.mrb[0].mxu0
        %v967 = vadd.f32 %v776, %v966
        %v968 = vpop.f32.mrb[0].mxu0
        %969 = vmatprep.mubr.f32.mxu0 %v738
        %970 = vmatmul.mubr.f32.gmra.mrb[0].mxu0 %v737
        %v971 = vpop.f32.mrb[0].mxu0
        %v972 = vadd.f32 %v777, %v971
        %v973 = vpop.f32.mrb[0].mxu0
        %974 = vmatprep.mubr.f32.mxu0 %v740
        %975 = vmatmul.mubr.f32.gmra.mrb[0].mxu0 %v739
        %v976 = vpop.f32.mrb[0].mxu0
        %v977 = vadd.f32 %v778, %v976
        %v978 = vpop.f32.mrb[0].mxu0
        %979 = vmatprep.mubr.f32.mxu0 %v742
        %980 = vmatmul.mubr.f32.gmra.mrb[0].mxu0 %v741
        %v981 = vpop.f32.mrb[0].mxu0
        %v982 = vadd.f32 %v779, %v981
        %v983 = vpop.f32.mrb[0].mxu0
        %984 = vmatprep.mubr.f32.mxu0 %v744
        %985 = vmatmul.mubr.f32.gmra.mrb[0].mxu0 %v743
        %v986 = vpop.f32.mrb[0].mxu0
        %v987 = vadd.f32 %v780, %v986
        %v988 = vpop.f32.mrb[0].mxu0
        %989 = vmatprep.mubr.f32.mxu0 %v746
        %990 = vmatmul.mubr.f32.gmra.mrb[0].mxu0 %v745
        %v991 = vpop.f32.mrb[0].mxu0
        %v992 = vadd.f32 %v781, %v991
        %v993 = vpop.f32.mrb[0].mxu0
        %994 = vmatprep.mubr.f32.mxu0 %v748
        %995 = vmatmul.mubr.f32.gmra.mrb[0].mxu0 %v747
        %v996 = vpop.f32.mrb[0].mxu0
        %v997 = vadd.f32 %v782, %v996
        %v998 = vpop.f32.mrb[0].mxu0
        %999 = vmatprep.mubr.f32.mxu0 %v750
        %1000 = vmatmul.mubr.f32.gmra.mrb[0].mxu0 %v749
        %v1001 = vpop.f32.mrb[0].mxu0
        %v1002 = vadd.f32 %v783, %v1001
        %v1003 = vpop.f32.mrb[0].mxu0
        %1004 = vmatprep.mubr.f32.mxu0 %v752
        %1005 = vmatmul.mubr.f32.gmra.mrb[0].mxu0 %v751
        %v1006 = vpop.f32.mrb[0].mxu0
        %v1007 = vadd.f32 %v784, %v1006
        %v1008 = vpop.f32.mrb[0].mxu0
        %1009 = vdwg.mxu0
        %v1010 = vxor.u32 %v852, 2147483648
        %v1011 = vxor.u32 %v857, 2147483648
        %v1012 = vxor.u32 %v862, 2147483648
        %v1013 = vxor.u32 %v867, 2147483648
        %v1014 = vxor.u32 %v872, 2147483648
        %v1015 = vxor.u32 %v877, 2147483648
        %v1016 = vxor.u32 %v882, 2147483648
        %v1017 = vxor.u32 %v887, 2147483648
        %v1018 = vxor.u32 %v892, 2147483648
        %v1019 = vxor.u32 %v897, 2147483648
        %v1020 = vxor.u32 %v902, 2147483648
        %v1021 = vxor.u32 %v907, 2147483648
        %v1022 = vxor.u32 %v912, 2147483648
        %v1023 = vxor.u32 %v917, 2147483648
        %v1024 = vxor.u32 %v922, 2147483648
        %v1025 = vxor.u32 %v927, 2147483648
        %v1026 = vxor.u32 %v932, 2147483648
        %v1027 = vxor.u32 %v937, 2147483648
        %v1028 = vxor.u32 %v942, 2147483648
        %v1029 = vxor.u32 %v947, 2147483648
        %v1030 = vxor.u32 %v952, 2147483648
        %v1031 = vxor.u32 %v957, 2147483648
        %v1032 = vxor.u32 %v962, 2147483648
        %v1033 = vxor.u32 %v967, 2147483648
        %v1034 = vxor.u32 %v972, 2147483648
        %v1035 = vxor.u32 %v977, 2147483648
        %v1036 = vxor.u32 %v982, 2147483648
        %v1037 = vxor.u32 %v987, 2147483648
        %v1038 = vxor.u32 %v992, 2147483648
        %v1039 = vxor.u32 %v997, 2147483648
        %v1040 = vxor.u32 %v1002, 2147483648
        %v1041 = vxor.u32 %v1007, 2147483648
        %v1042 = vmul.f32 %v1010, 1.442695
        %v1043 = vpow.pop %v1042
        %v1044 = vmul.f32 %v1011, 1.442695
        %v1045 = vpow.pop %v1044
        %v1046 = vmul.f32 %v1012, 1.442695
        %v1047 = vpow.pop %v1046
        %v1048 = vmul.f32 %v1013, 1.442695
        %v1049 = vpow.pop %v1048
        %v1050 = vmul.f32 %v1014, 1.442695
        %v1051 = vpow.pop %v1050
        %v1052 = vmul.f32 %v1015, 1.442695
        %v1053 = vpow.pop %v1052
        %v1054 = vmul.f32 %v1016, 1.442695
        %v1055 = vpow.pop %v1054
        %v1056 = vmul.f32 %v1017, 1.442695
        %v1057 = vpow.pop %v1056
        %v1058 = vmul.f32 %v1018, 1.442695
        %v1059 = vpow.pop %v1058
        %v1060 = vmul.f32 %v1019, 1.442695
        %v1061 = vpow.pop %v1060
        %v1062 = vmul.f32 %v1020, 1.442695
        %v1063 = vpow.pop %v1062
        %v1064 = vmul.f32 %v1021, 1.442695
        %v1065 = vpow.pop %v1064
        %v1066 = vmul.f32 %v1022, 1.442695
        %v1067 = vpow.pop %v1066
        %v1068 = vmul.f32 %v1023, 1.442695
        %v1069 = vpow.pop %v1068
        %v1070 = vmul.f32 %v1024, 1.442695
        %v1071 = vpow.pop %v1070
        %v1072 = vmul.f32 %v1025, 1.442695
        %v1073 = vpow.pop %v1072
        %v1074 = vmul.f32 %v1026, 1.442695
        %v1075 = vpow.pop %v1074
        %v1076 = vmul.f32 %v1027, 1.442695
        %v1077 = vpow.pop %v1076
        %v1078 = vmul.f32 %v1028, 1.442695
        %v1079 = vpow.pop %v1078
        %v1080 = vmul.f32 %v1029, 1.442695
        %v1081 = vpow.pop %v1080
        %v1082 = vmul.f32 %v1030, 1.442695
        %v1083 = vpow.pop %v1082
        %v1084 = vmul.f32 %v1031, 1.442695
        %v1085 = vpow.pop %v1084
        %v1086 = vmul.f32 %v1032, 1.442695
        %v1087 = vpow.pop %v1086
        %v1088 = vmul.f32 %v1033, 1.442695
        %v1089 = vpow.pop %v1088
        %v1090 = vmul.f32 %v1034, 1.442695
        %v1091 = vpow.pop %v1090
        %v1092 = vmul.f32 %v1035, 1.442695
        %v1093 = vpow.pop %v1092
        %v1094 = vmul.f32 %v1036, 1.442695
        %v1095 = vpow.pop %v1094
        %v1096 = vmul.f32 %v1037, 1.442695
        %v1097 = vpow.pop %v1096
        %v1098 = vmul.f32 %v1038, 1.442695
        %v1099 = vpow.pop %v1098
        %v1100 = vmul.f32 %v1039, 1.442695
        %v1101 = vpow.pop %v1100
        %v1102 = vmul.f32 %v1040, 1.442695
        %v1103 = vpow.pop %v1102
        %v1104 = vmul.f32 %v1041, 1.442695
        %v1105 = vpow.pop %v1104
        %v1106 = vadd.f32 %v1043, 1.0
        %v1107 = vadd.f32 %v1045, 1.0
        %v1108 = vadd.f32 %v1047, 1.0
        %v1109 = vadd.f32 %v1049, 1.0
        %v1110 = vadd.f32 %v1051, 1.0
        %v1111 = vadd.f32 %v1053, 1.0
        %v1112 = vadd.f32 %v1055, 1.0
        %v1113 = vadd.f32 %v1057, 1.0
        %v1114 = vadd.f32 %v1059, 1.0
        %v1115 = vadd.f32 %v1061, 1.0
        %v1116 = vadd.f32 %v1063, 1.0
        %v1117 = vadd.f32 %v1065, 1.0
        %v1118 = vadd.f32 %v1067, 1.0
        %v1119 = vadd.f32 %v1069, 1.0
        %v1120 = vadd.f32 %v1071, 1.0
        %v1121 = vadd.f32 %v1073, 1.0
        %v1122 = vadd.f32 %v1075, 1.0
        %v1123 = vadd.f32 %v1077, 1.0
        %v1124 = vadd.f32 %v1079, 1.0
        %v1125 = vadd.f32 %v1081, 1.0
        %v1126 = vadd.f32 %v1083, 1.0
        %v1127 = vadd.f32 %v1085, 1.0
        %v1128 = vadd.f32 %v1087, 1.0
        %v1129 = vadd.f32 %v1089, 1.0
        %v1130 = vadd.f32 %v1091, 1.0
        %v1131 = vadd.f32 %v1093, 1.0
        %v1132 = vadd.f32 %v1095, 1.0
        %v1133 = vadd.f32 %v1097, 1.0
        %v1134 = vadd.f32 %v1099, 1.0
        %v1135 = vadd.f32 %v1101, 1.0
        %v1136 = vadd.f32 %v1103, 1.0
        %v1137 = vadd.f32 %v1105, 1.0
        %v1138 = vrcp.pop %v1106
        %v1139 = vmul.f32 1.0, %v1138
        %v1140 = vrcp.pop %v1107
        %v1141 = vmul.f32 1.0, %v1140
        %v1142 = vrcp.pop %v1108
        %v1143 = vmul.f32 1.0, %v1142
        %v1144 = vrcp.pop %v1109
        %v1145 = vmul.f32 1.0, %v1144
        %v1146 = vrcp.pop %v1110
        %v1147 = vmul.f32 1.0, %v1146
        %v1148 = vrcp.pop %v1111
        %v1149 = vmul.f32 1.0, %v1148
        %v1150 = vrcp.pop %v1112
        %v1151 = vmul.f32 1.0, %v1150
        %v1152 = vrcp.pop %v1113
        %v1153 = vmul.f32 1.0, %v1152
        %v1154 = vrcp.pop %v1114
        %v1155 = vmul.f32 1.0, %v1154
        %v1156 = vrcp.pop %v1115
        %v1157 = vmul.f32 1.0, %v1156
        %v1158 = vrcp.pop %v1116
        %v1159 = vmul.f32 1.0, %v1158
        %v1160 = vrcp.pop %v1117
        %v1161 = vmul.f32 1.0, %v1160
        %v1162 = vrcp.pop %v1118
        %v1163 = vmul.f32 1.0, %v1162
        %v1164 = vrcp.pop %v1119
        %v1165 = vmul.f32 1.0, %v1164
        %v1166 = vrcp.pop %v1120
        %v1167 = vmul.f32 1.0, %v1166
        %v1168 = vrcp.pop %v1121
        %v1169 = vmul.f32 1.0, %v1168
        %v1170 = vrcp.pop %v1122
        %v1171 = vmul.f32 1.0, %v1170
        %v1172 = vrcp.pop %v1123
        %v1173 = vmul.f32 1.0, %v1172
        %v1174 = vrcp.pop %v1124
        %v1175 = vmul.f32 1.0, %v1174
        %v1176 = vrcp.pop %v1125
        %v1177 = vmul.f32 1.0, %v1176
        %v1178 = vrcp.pop %v1126
        %v1179 = vmul.f32 1.0, %v1178
        %v1180 = vrcp.pop %v1127
        %v1181 = vmul.f32 1.0, %v1180
        %v1182 = vrcp.pop %v1128
        %v1183 = vmul.f32 1.0, %v1182
        %v1184 = vrcp.pop %v1129
        %v1185 = vmul.f32 1.0, %v1184
        %v1186 = vrcp.pop %v1130
        %v1187 = vmul.f32 1.0, %v1186
        %v1188 = vrcp.pop %v1131
        %v1189 = vmul.f32 1.0, %v1188
        %v1190 = vrcp.pop %v1132
        %v1191 = vmul.f32 1.0, %v1190
        %v1192 = vrcp.pop %v1133
        %v1193 = vmul.f32 1.0, %v1192
        %v1194 = vrcp.pop %v1134
        %v1195 = vmul.f32 1.0, %v1194
        %v1196 = vrcp.pop %v1135
        %v1197 = vmul.f32 1.0, %v1196
        %v1198 = vrcp.pop %v1136
        %v1199 = vmul.f32 1.0, %v1198
        %v1200 = vrcp.pop %v1137
        %v1201 = vmul.f32 1.0, %v1200
        %vm1202 = vcmask 7168
        %1203 = vst.msk [vmem:[%s252] sm:$0xff] %vm1202, %v1139
        %1204 = vst.msk [vmem:[%s252 + $0x8] sm:$0xff] %vm1202, %v1141
        %1205 = vst.msk [vmem:[%s252 + $0x10] sm:$0xff] %vm1202, %v1143
        %1206 = vst.msk [vmem:[%s252 + $0x18] sm:$0xff] %vm1202, %v1145
        %1207 = vst.msk [vmem:[%s252 + $0x20] sm:$0xff] %vm1202, %v1147
        %1208 = vst.msk [vmem:[%s252 + $0x28] sm:$0xff] %vm1202, %v1149
        %1209 = vst.msk [vmem:[%s252 + $0x30] sm:$0xff] %vm1202, %v1151
        %1210 = vst.msk [vmem:[%s252 + $0x38] sm:$0xff] %vm1202, %v1153
        %1211 = vst.msk [vmem:[%s252 + $0x40] sm:$0xff] %vm1202, %v1155
        %1212 = vst.msk [vmem:[%s252 + $0x48] sm:$0xff] %vm1202, %v1157
        %1213 = vst.msk [vmem:[%s252 + $0x50] sm:$0xff] %vm1202, %v1159
        %1214 = vst.msk [vmem:[%s252 + $0x58] sm:$0xff] %vm1202, %v1161
        %1215 = vst.msk [vmem:[%s252 + $0x60] sm:$0xff] %vm1202, %v1163
        %1216 = vst.msk [vmem:[%s252 + $0x68] sm:$0xff] %vm1202, %v1165
        %1217 = vst.msk [vmem:[%s252 + $0x70] sm:$0xff] %vm1202, %v1167
        %1218 = vst.msk [vmem:[%s252 + $0x78] sm:$0xff] %vm1202, %v1169
        %1219 = vst.msk [vmem:[%s252 + $0x80] sm:$0xff] %vm1202, %v1171
        %1220 = vst.msk [vmem:[%s252 + $0x88] sm:$0xff] %vm1202, %v1173
        %1221 = vst.msk [vmem:[%s252 + $0x90] sm:$0xff] %vm1202, %v1175
        %1222 = vst.msk [vmem:[%s252 + $0x98] sm:$0xff] %vm1202, %v1177
        %1223 = vst.msk [vmem:[%s252 + $0xa0] sm:$0xff] %vm1202, %v1179
        %1224 = vst.msk [vmem:[%s252 + $0xa8] sm:$0xff] %vm1202, %v1181
        %1225 = vst.msk [vmem:[%s252 + $0xb0] sm:$0xff] %vm1202, %v1183
        %1226 = vst.msk [vmem:[%s252 + $0xb8] sm:$0xff] %vm1202, %v1185
        %1227 = vst.msk [vmem:[%s252 + $0xc0] sm:$0xff] %vm1202, %v1187
        %1228 = vst.msk [vmem:[%s252 + $0xc8] sm:$0xff] %vm1202, %v1189
        %1229 = vst.msk [vmem:[%s252 + $0xd0] sm:$0xff] %vm1202, %v1191
        %1230 = vst.msk [vmem:[%s252 + $0xd8] sm:$0xff] %vm1202, %v1193
        %1231 = vst.msk [vmem:[%s252 + $0xe0] sm:$0xff] %vm1202, %v1195
        %1232 = vst.msk [vmem:[%s252 + $0xe8] sm:$0xff] %vm1202, %v1197
        %1233 = vst.msk [vmem:[%s252 + $0xf0] sm:$0xff] %vm1202, %v1199
        %1234 = vst.msk [vmem:[%s252 + $0xf8] sm:$0xff] %vm1202, %v1201
      $region48: #{tpu_custom_call.1} parent=39 // pred_fallthru
        _
      %p1235 = scmp.lt.s32.totalorder %s20, 1
      %s1236 = scalar_select %p1235, %s20, 1
      %s1237 = smul.addr %s1236, 32
      %s1238 = smul.addr %s1237, 8
      %s1239 = scalar_lea.vmem %s5, %s1238
      // Predicated region
      $region49: #{tpu_custom_call.1} parent=39 // pred_check
        %p1240 = pneg %p158
      $region50: #{tpu_custom_call.1} parent=39 // pred_check_branch
        %1242 = sbr.rel (%p1240) target = $region52
      $region51: #{tpu_custom_call.1} parent=39 // pred_region
        _
      $region52: #{tpu_custom_call.1} parent=39 // pred_fallthru
        _
    $region40: #{tpu_custom_call.1} parent=5 // pred_fallthru
      _
    %p1243 = scmp.le.s32.totalorder 2, %s11
    // Predicated region
    $region53: #{tpu_custom_call.1} parent=5 // pred_check
      %p1244 = pneg %p1243
    $region54: #{tpu_custom_call.1} parent=5 // pred_check_branch
      %1246 = sbr.rel (%p1244) target = $region56
    $region55: #{tpu_custom_call.1} parent=5 // pred_region
      %s1247 = ssub.s32 %s11, 2
      // Predicated region
      $region57: #{tpu_custom_call.1} parent=55 // pred_check
        %p1248 = pneg %p164
      $region58: #{tpu_custom_call.1} parent=55 // pred_check_branch
        %1250 = sbr.rel (%p1248) target = $region60
      $region59: #{tpu_custom_call.1} parent=55 // pred_region
        %p1251 = scmp.lt.s32.totalorder %s22, 1
        %s1252 = scalar_select %p1251, %s22, 1
        %s1253 = smul.addr %s1252, 32
        %s1254 = smul.addr %s1253, 8
        %s1255 = scalar_lea.vmem %s5, %s1254
      $region60: #{tpu_custom_call.1} parent=55 // pred_fallthru
        _
    $region56: #{tpu_custom_call.1} parent=5 // pred_fallthru
      _
  $region6: #{tpu_custom_call.1} parent=0 // loop_footer
    %s15 = sadd.s32 1, %s11
  $region7: #{tpu_custom_call.1} parent=0 // loop_footer_branch
    %10 = sbr.rel target = $region3
  $region8: #{tpu_custom_call.1} parent=0 // loop_exit
    _

</llo_original>
